<compile_context>
chip_gen: v5e
topology: v5e:2x2
jax: 0.10.0
libtpu: 0.0.40
codegen_flags: <defaults>
</compile_context>

<pallas_src>
import functools

import jax
import jax.numpy as jnp
from jax import lax
from jax.experimental import pallas as pl
from jax.experimental.pallas import tpu as pltpu


# ----------------------------------------------------------------------------
# Pallas kernel: one tile of TB graphs, node-major rows (row n*TB + b = node n
# of graph b).  Initial embedding MLP -> n_mp message-passing rounds
# (aggregate + fused update MLP + residual) -> output MLP -> proportional
# allocation -> lane-dense output slab.
# ----------------------------------------------------------------------------
def _gnn_kernel(s_ref, whinv_ref, w_ref, b_ref, out_ref, *,
                n_mp, n_nodes, tb, dp, hd):
    f32 = jnp.float32
    N = n_nodes
    H = hd                                   # hidden width == embedding width
    # ---- unpack packed weight slab (all row offsets are multiples of 8) ----
    o = 0
    w1_ie = w_ref[o:o + dp, :]; o += dp          # (dp, H)
    w2_ie = w_ref[o:o + H, :];  o += H           # (H, H)
    w1_u = w_ref[o:o + 3 * H, :]; o += 3 * H     # (3H, H) fused [self|sup|rec]
    w2_u = w_ref[o:o + H, :];   o += H           # (H, H)
    w1_o = w_ref[o:o + H, :];   o += H           # (H, H)
    w2_o = w_ref[o:o + H, 0:1]                   # (H, 1)  only col 0 is real
    b = b_ref[...]
    b1_ie, b2_ie = b[0:1, :], b[1:2, :]
    b1_u, b2_u = b[2:3, :], b[3:4, :]
    b1_o, b2_o = b[4:5, :], b[5:6, 0:1]

    # ---- initial embedding MLP over all (node, graph) rows at once ---------
    x = s_ref[0]                                                    # (N*TB, dp)
    h0 = jnp.maximum(jnp.dot(x, w1_ie, preferred_element_type=f32) + b1_ie, 0.0)
    nodes = jnp.dot(h0, w2_ie, preferred_element_type=f32) + b2_ie  # (N*TB, H)

    # hoisted loop invariants
    zeros_wh = jnp.zeros((tb, H), f32)
    zeros_st = jnp.zeros(((N - 1) * tb, H), f32)
    inv_ns = 1.0 / (N - 1)

    # ---- message passing rounds --------------------------------------------
    for _ in range(n_mp):
        wh_node = nodes[0:tb, :]                       # warehouse embeddings (TB, H)
        store_sum = nodes[tb:2 * tb, :]
        for n in range(2, N):
            store_sum = store_sum + nodes[n * tb:(n + 1) * tb, :]
        store_mean = store_sum * inv_ns                # (TB, H)

        # supplier agg: warehouse rows -> 0, store rows -> warehouse embedding
        sup = jnp.concatenate([zeros_wh] + [wh_node] * (N - 1), axis=0)
        # recipient agg: warehouse rows -> mean(store embeddings), store rows -> 0
        rec = jnp.concatenate([store_mean, zeros_st], axis=0)

        # fused update MLP: single K = 3H matmul on [self | sup | rec]
        cat = jnp.concatenate([nodes, sup, rec], axis=1)            # (N*TB, 3H)
        hu = jnp.maximum(jnp.dot(cat, w1_u, preferred_element_type=f32) + b1_u, 0.0)
        nodes = nodes + jnp.dot(hu, w2_u, preferred_element_type=f32) + b2_u

    # ---- output MLP ---------------------------------------------------------
    ho = jnp.maximum(jnp.dot(nodes, w1_o, preferred_element_type=f32) + b1_o, 0.0)
    out = jnp.dot(ho, w2_o, preferred_element_type=f32) + b2_o      # (N*TB, 1)

    # ---- proportional allocation, vectorized over the TB graphs ------------
    wh_alloc = out[0:tb, :]                                         # (TB, 1)
    ssum = out[tb:2 * tb, :]
    for n in range(2, N):
        ssum = ssum + out[n * tb:(n + 1) * tb, :]
    denom = ssum + 1e-15
    r = pl.reciprocal(denom, approx=True)          # EUP slot
    r = r * (2.0 - denom * r)                      # one Newton step -> ~f32 exact
    total = whinv_ref[...]                         # (TB, 1) warehouse inv[...,0]
    ratio = jnp.minimum(total * r, 1.0)

    # ---- lane-dense output slab: lane 0 = warehouse, lanes 1..N-1 = stores --
    lane = lax.broadcasted_iota(jnp.int32, (1, 128), 1)
    slab = jnp.where(lane == 0, wh_alloc, 0.0)
    for n in range(1, N):
        slab = slab + jnp.where(lane == n, out[n * tb:(n + 1) * tb, :] * ratio, 0.0)
    out_ref[...] = slab                                             # (TB, 128)


# ----------------------------------------------------------------------------
# Wrapper: packs weights into slabs, tiles the batch node-major, calls Pallas.
# ----------------------------------------------------------------------------
def _pack_params(p, din, dp, hd):
    """Pack per-layer weights into one (dp+7H, H) weight slab + one (6, H) bias slab."""
    w1_ie = jnp.zeros((dp, hd), jnp.float32).at[:din, :].set(p['w1_ie'])
    w2_o = jnp.zeros((hd, hd), jnp.float32).at[:, 0:1].set(p['w2_o'])
    w_slab = jnp.concatenate(
        [w1_ie, p['w2_ie'], p['w1_u'], p['w2_u'], p['w1_o'], w2_o], axis=0)

    def brow(v):
        v = jnp.asarray(v, jnp.float32).reshape(1, -1)
        return jnp.zeros((1, hd), jnp.float32).at[:, :v.shape[1]].set(v)

    b_slab = jnp.concatenate([brow(p['b1_ie']), brow(p['b2_ie']),
                              brow(p['b1_u']), brow(p['b2_u']),
                              brow(p['b1_o']), brow(p['b2_o'])], axis=0)
    return w_slab.astype(jnp.float32), b_slab.astype(jnp.float32)


def gnn_mp_forward(states, warehouse_inventories, params, n_mp=2, tb=128):
    """Pallas-backed forward.

    states: (B, N, Din), node 0 = warehouse, nodes 1.. = stores.
    warehouse_inventories: (B, 1, Lw).
    tb: graphs per grid step (multiple of 8; 128-512 recommended; keep >= 2
        grid tiles so v7x's two TensorCores both get work).
    """
    B, N, Din = states.shape
    hd = params['w2_ie'].shape[1]
    assert params['w1_ie'].shape[1] == hd and params['w1_u'].shape[0] == 3 * hd, \
        "kernel assumes hidden width == embedding width"
    assert tb % 8 == 0 and N <= 128

    dp = ((Din + 7) // 8) * 8                     # sublane-aligned feature width
    b_pad = ((B + tb - 1) // tb) * tb
    nt = b_pad // tb

    # Pad features/batch, then lay out node-major per tile:
    # row n*tb + b_local of tile t = node n of graph t*tb + b_local.
    sp = jnp.pad(states.astype(jnp.float32),
                 ((0, b_pad - B), (0, 0), (0, dp - Din)))
    s_tiled = sp.reshape(nt, tb, N, dp).transpose(0, 2, 1, 3).reshape(nt, N * tb, dp)

    wh_first = jnp.pad(warehouse_inventories[:, 0, 0:1].astype(jnp.float32),
                       ((0, b_pad - B), (0, 0)))                     # (b_pad, 1)

    w_slab, b_slab = _pack_params(params, Din, dp, hd)

    kernel = functools.partial(_gnn_kernel, n_mp=n_mp, n_nodes=N, tb=tb,
                               dp=dp, hd=hd)

    out = pl.pallas_call(
        kernel,
        grid=(nt,),
        in_specs=[
            pl.BlockSpec((1, N * tb, dp), lambda t: (t, 0, 0)),   # states tile
            pl.BlockSpec((tb, 1), lambda t: (t, 0)),              # warehouse inv[...,0]
            pl.BlockSpec(w_slab.shape, lambda t: (0, 0)),         # weight slab (resident)
            pl.BlockSpec(b_slab.shape, lambda t: (0, 0)),         # bias slab (resident)
        ],
        out_specs=pl.BlockSpec((tb, 128), lambda t: (t, 0)),
        out_shape=jax.ShapeDtypeStruct((b_pad, 128), jnp.float32),
        compiler_params=pltpu.CompilerParams(
            dimension_semantics=("parallel",)),
    )(s_tiled, wh_first, w_slab, b_slab)

    return {'stores': out[:B, 1:N], 'warehouses': out[:B, 0:1]}


# ----------------------------------------------------------------------------
# Plain-JAX glue: build the `states` tensor exactly like the PyTorch forward.
# ----------------------------------------------------------------------------
def build_states(obs):
    store_inv = obs['store_inventories'].astype(jnp.float32)       # (B, S, Ls)
    wh_inv = obs['warehouse_inventories'].astype(jnp.float32)      # (B, 1, Lw)
    store_params = jnp.stack([obs['mean'], obs['std'],
                              obs['underage_costs'], obs['lead_times']], axis=2)
    store_state = jnp.concatenate([store_inv, store_params.astype(jnp.float32)], axis=2)

    store_inv_len = store_inv.shape[2]
    wh_inv_len = wh_inv.shape[2]
    max_inv_len = max(store_inv_len, wh_inv_len)
    store_prim = store_state.shape[2] - store_inv_len
    wh_prim = wh_inv.shape[2] - wh_inv_len
    max_prim = max(store_prim, wh_prim)

    def pad_features(t, inv_len):
        inv = t[:, :, :inv_len]
        prim = t[:, :, inv_len:]
        inv = jnp.pad(inv, ((0, 0), (0, 0), (0, max_inv_len - inv_len)))
        prim = jnp.pad(prim, ((0, 0), (0, 0), (0, max_prim - prim.shape[2])))
        return jnp.concatenate([inv, prim], axis=2)

    store_padded = pad_features(store_state, store_inv_len)
    wh_padded = pad_features(wh_inv, wh_inv_len)
    states = jnp.concatenate([wh_padded, store_padded], axis=1)     # (B, N, F)
    B, N, _ = states.shape
    face = jnp.zeros((B, N, 2), jnp.float32)
    face = face.at[:, :1, 0].set(1.0)
    face = face.at[:, 1:, 1].set(1.0)
    return jnp.concatenate([states, face], axis=-1)


def init_params(key, din, hidden, emb):
    ks = jax.random.split(key, 12)
    lin = lambda k, i, o: jax.random.normal(k, (i, o), jnp.float32) * 0.1
    vec = lambda k, o: jax.random.normal(k, (o,), jnp.float32) * 0.05
    p = {}
    p['w1_ie'], p['b1_ie'] = lin(ks[0], din, hidden), vec(ks[1], hidden)
    p['w2_ie'], p['b2_ie'] = lin(ks[2], hidden, emb), vec(ks[3], emb)
    # update_embedding first layer acts on [self ; supplier_agg ; recipient_agg]
    p['w1_u'], p['b1_u'] = lin(ks[4], 3 * emb, hidden), vec(ks[5], hidden)
    p['w2_u'], p['b2_u'] = lin(ks[6], hidden, emb), vec(ks[7], emb)
    p['w1_o'], p['b1_o'] = lin(ks[8], emb, hidden), vec(ks[9], hidden)
    p['w2_o'], p['b2_o'] = lin(ks[10], hidden, 1), vec(ks[11], 1)
    return p


# Pure-JAX reference (same math as the PyTorch module) for correctness checking.
def reference_forward(states, wh_inv, p, n_mp=2):
    def mlp(x, w1, b1, w2, b2):
        return jnp.maximum(x @ w1 + b1, 0.0) @ w2 + b2

    nodes = mlp(states, p['w1_ie'], p['b1_ie'], p['w2_ie'], p['b2_ie'])
    B, N, H = nodes.shape
    for _ in range(n_mp):
        wh = nodes[:, :1, :]
        mean_store = nodes[:, 1:, :].mean(axis=1, keepdims=True)
        sup = jnp.concatenate([jnp.zeros_like(wh),
                               jnp.broadcast_to(wh, (B, N - 1, H))], axis=1)
        rec = jnp.concatenate([mean_store, jnp.zeros((B, N - 1, H), nodes.dtype)], axis=1)
        upd_in = jnp.concatenate([nodes, sup, rec], axis=-1)
        nodes = nodes + mlp(upd_in, p['w1_u'], p['b1_u'], p['w2_u'], p['b2_u'])
    outputs = mlp(nodes, p['w1_o'], p['b1_o'], p['w2_o'], p['b2_o'])
    wh_alloc = outputs[:, :1, 0]
    store_int = outputs[:, 1:, 0]
    total = wh_inv[:, 0, 0]
    ratio = jnp.minimum(total / (store_int.sum(axis=1) + 1e-15), 1.0)
    return store_int * ratio[:, None], wh_alloc


if __name__ == "__main__":
    key = jax.random.PRNGKey(0)
    B, n_stores = 60, 6
    store_inv_len, wh_inv_len = 3, 2
    hidden = 32
    TB = 32                     # 60 graphs -> 2 grid tiles (keeps both v7x TCs busy)

    k_obs, k_par = jax.random.split(key)
    ks = jax.random.split(k_obs, 6)
    obs = {
        'store_inventories': jax.random.uniform(ks[0], (B, n_stores, store_inv_len), jnp.float32, 0.0, 5.0),
        'mean': jax.random.uniform(ks[1], (B, n_stores), jnp.float32, 1.0, 3.0),
        'std': jax.random.uniform(ks[2], (B, n_stores), jnp.float32, 0.1, 1.0),
        'underage_costs': jax.random.uniform(ks[3], (B, n_stores), jnp.float32, 1.0, 9.0),
        'lead_times': jax.random.uniform(ks[4], (B, n_stores), jnp.float32, 1.0, 4.0),
        'warehouse_inventories': jax.random.uniform(ks[5], (B, 1, wh_inv_len), jnp.float32, 0.0, 10.0),
    }

    states = build_states(obs)                          # (B, 1 + n_stores, Din)
    params = init_params(k_par, states.shape[-1], hidden, hidden)

    out = gnn_mp_forward(states, obs['warehouse_inventories'], params, n_mp=2, tb=TB)
    jax.block_until_ready(out)

    ref_stores, ref_wh = reference_forward(states, obs['warehouse_inventories'], params, n_mp=2)
    assert out['stores'].shape == (B, n_stores) and out['warehouses'].shape == (B, 1)
    assert jnp.allclose(out['stores'], ref_stores, atol=1e-3, rtol=1e-3)
    assert jnp.allclose(out['warehouses'], ref_wh, atol=1e-3, rtol=1e-3)

    print("KERNEL_OK")
</pallas_src>

<mosaic_0001>
module attributes {stable_mosaic.version = 11 : i64} {
  func.func @_gnn_kernel(%arg0: i32, %arg1: memref<1x224x16xf32, #tpu.memory_space<vmem>>, %arg2: memref<32x1xf32, #tpu.memory_space<vmem>>, %arg3: memref<240x32xf32, #tpu.memory_space<vmem>>, %arg4: memref<6x32xf32, #tpu.memory_space<vmem>>, %arg5: memref<32x128xf32, #tpu.memory_space<vmem>>) attributes {dimension_semantics = [#tpu.dimension_semantics<parallel>], iteration_bounds = array<i64: 2>, scalar_prefetch = 0 : i64, scratch_operands = 0 : i64, tpu.core_type = #tpu.core_type<tc>, window_params = [{transform_indices = @transform_0, window_bounds = array<i64: 1, 224, 16>}, {transform_indices = @transform_1, window_bounds = array<i64: 32, 1>}, {pipeline_mode = #tpu.pipeline_mode<synchronous>, transform_indices = @transform_2, window_bounds = array<i64: 240, 32>}, {pipeline_mode = #tpu.pipeline_mode<synchronous>, transform_indices = @transform_3, window_bounds = array<i64: 6, 32>}, {transform_indices = @transform_4, window_bounds = array<i64: 32, 128>}]} {
    %c0 = arith.constant 0 : index
    %c0_0 = arith.constant 0 : index
    %0 = vector.load %arg3[%c0, %c0_0] : memref<240x32xf32, #tpu.memory_space<vmem>>, vector<16x32xf32>
    %c16 = arith.constant 16 : index
    %c0_1 = arith.constant 0 : index
    %1 = vector.load %arg3[%c16, %c0_1] : memref<240x32xf32, #tpu.memory_space<vmem>>, vector<32x32xf32>
    %c48 = arith.constant 48 : index
    %c0_2 = arith.constant 0 : index
    %2 = vector.load %arg3[%c48, %c0_2] : memref<240x32xf32, #tpu.memory_space<vmem>>, vector<96x32xf32>
    %c144 = arith.constant 144 : index
    %c0_3 = arith.constant 0 : index
    %3 = vector.load %arg3[%c144, %c0_3] : memref<240x32xf32, #tpu.memory_space<vmem>>, vector<32x32xf32>
    %c176 = arith.constant 176 : index
    %c0_4 = arith.constant 0 : index
    %4 = vector.load %arg3[%c176, %c0_4] : memref<240x32xf32, #tpu.memory_space<vmem>>, vector<32x32xf32>
    %c208 = arith.constant 208 : index
    %c0_5 = arith.constant 0 : index
    %5 = vector.load %arg3[%c208, %c0_5] : memref<240x32xf32, #tpu.memory_space<vmem>>, vector<32x1xf32>
    %c0_6 = arith.constant 0 : index
    %c0_7 = arith.constant 0 : index
    %6 = vector.load %arg4[%c0_6, %c0_7] : memref<6x32xf32, #tpu.memory_space<vmem>>, vector<6x32xf32>
    %7 = vector.extract_strided_slice %6 {offsets = [0, 0], sizes = [1, 32], strides = [1, 1]} : vector<6x32xf32> to vector<1x32xf32>
    %8 = vector.extract_strided_slice %6 {offsets = [1, 0], sizes = [1, 32], strides = [1, 1]} : vector<6x32xf32> to vector<1x32xf32>
    %9 = vector.extract_strided_slice %6 {offsets = [2, 0], sizes = [1, 32], strides = [1, 1]} : vector<6x32xf32> to vector<1x32xf32>
    %10 = vector.extract_strided_slice %6 {offsets = [3, 0], sizes = [1, 32], strides = [1, 1]} : vector<6x32xf32> to vector<1x32xf32>
    %11 = vector.extract_strided_slice %6 {offsets = [4, 0], sizes = [1, 32], strides = [1, 1]} : vector<6x32xf32> to vector<1x32xf32>
    %12 = vector.extract_strided_slice %6 {offsets = [5, 0], sizes = [1, 1], strides = [1, 1]} : vector<6x32xf32> to vector<1x1xf32>
    %c0_8 = arith.constant 0 : index
    %c0_9 = arith.constant 0 : index
    %c0_10 = arith.constant 0 : index
    %13 = vector.load %arg1[%c0_8, %c0_9, %c0_10] : memref<1x224x16xf32, #tpu.memory_space<vmem>>, vector<1x224x16xf32>
    %14 = vector.shape_cast %13 : vector<1x224x16xf32> to vector<224x16xf32>
    %cst = arith.constant dense<0.000000e+00> : vector<224x32xf32>
    %15 = tpu.matmul %14, %0, %cst {dimension_numbers = #tpu.dot_dimension_numbers<[1], [0], [0], [1], [0, 0, 1, 1], [], []>} : vector<224x16xf32>, vector<16x32xf32>, vector<224x32xf32> -> vector<224x32xf32>
    %16 = vector.broadcast %7 : vector<1x32xf32> to vector<224x32xf32>
    %17 = arith.addf %15, %16 : vector<224x32xf32>
    %cst_11 = arith.constant 0.000000e+00 : f32
    %18 = vector.broadcast %cst_11 : f32 to vector<224x32xf32>
    %19 = arith.maximumf %17, %18 : vector<224x32xf32>
    %cst_12 = arith.constant dense<0.000000e+00> : vector<224x32xf32>
    %20 = tpu.matmul %19, %1, %cst_12 {dimension_numbers = #tpu.dot_dimension_numbers<[1], [0], [0], [1], [0, 0, 1, 1], [], []>} : vector<224x32xf32>, vector<32x32xf32>, vector<224x32xf32> -> vector<224x32xf32>
    %21 = vector.broadcast %8 : vector<1x32xf32> to vector<224x32xf32>
    %22 = arith.addf %20, %21 : vector<224x32xf32>
    %cst_13 = arith.constant 0.000000e+00 : f32
    %23 = vector.broadcast %cst_13 : f32 to vector<32x32xf32>
    %cst_14 = arith.constant 0.000000e+00 : f32
    %24 = vector.broadcast %cst_14 : f32 to vector<192x32xf32>
    %25 = vector.extract_strided_slice %22 {offsets = [0, 0], sizes = [32, 32], strides = [1, 1]} : vector<224x32xf32> to vector<32x32xf32>
    %26 = vector.extract_strided_slice %22 {offsets = [32, 0], sizes = [32, 32], strides = [1, 1]} : vector<224x32xf32> to vector<32x32xf32>
    %27 = vector.extract_strided_slice %22 {offsets = [64, 0], sizes = [32, 32], strides = [1, 1]} : vector<224x32xf32> to vector<32x32xf32>
    %28 = arith.addf %26, %27 : vector<32x32xf32>
    %29 = vector.extract_strided_slice %22 {offsets = [96, 0], sizes = [32, 32], strides = [1, 1]} : vector<224x32xf32> to vector<32x32xf32>
    %30 = arith.addf %28, %29 : vector<32x32xf32>
    %31 = vector.extract_strided_slice %22 {offsets = [128, 0], sizes = [32, 32], strides = [1, 1]} : vector<224x32xf32> to vector<32x32xf32>
    %32 = arith.addf %30, %31 : vector<32x32xf32>
    %33 = vector.extract_strided_slice %22 {offsets = [160, 0], sizes = [32, 32], strides = [1, 1]} : vector<224x32xf32> to vector<32x32xf32>
    %34 = arith.addf %32, %33 : vector<32x32xf32>
    %35 = vector.extract_strided_slice %22 {offsets = [192, 0], sizes = [32, 32], strides = [1, 1]} : vector<224x32xf32> to vector<32x32xf32>
    %36 = arith.addf %34, %35 : vector<32x32xf32>
    %cst_15 = arith.constant 0.166666672 : f32
    %37 = vector.broadcast %cst_15 : f32 to vector<32x32xf32>
    %38 = arith.mulf %36, %37 : vector<32x32xf32>
    %39 = tpu.concatenate %23, %25, %25, %25, %25, %25, %25 in 0 : vector<32x32xf32>, vector<32x32xf32>, vector<32x32xf32>, vector<32x32xf32>, vector<32x32xf32>, vector<32x32xf32>, vector<32x32xf32> -> vector<224x32xf32>
    %40 = tpu.concatenate %38, %24 in 0 : vector<32x32xf32>, vector<192x32xf32> -> vector<224x32xf32>
    %41 = tpu.concatenate %22, %39, %40 in 1 : vector<224x32xf32>, vector<224x32xf32>, vector<224x32xf32> -> vector<224x96xf32>
    %cst_16 = arith.constant dense<0.000000e+00> : vector<224x32xf32>
    %42 = tpu.matmul %41, %2, %cst_16 {dimension_numbers = #tpu.dot_dimension_numbers<[1], [0], [0], [1], [0, 0, 1, 1], [], []>} : vector<224x96xf32>, vector<96x32xf32>, vector<224x32xf32> -> vector<224x32xf32>
    %43 = vector.broadcast %9 : vector<1x32xf32> to vector<224x32xf32>
    %44 = arith.addf %42, %43 : vector<224x32xf32>
    %cst_17 = arith.constant 0.000000e+00 : f32
    %45 = vector.broadcast %cst_17 : f32 to vector<224x32xf32>
    %46 = arith.maximumf %44, %45 : vector<224x32xf32>
    %cst_18 = arith.constant dense<0.000000e+00> : vector<224x32xf32>
    %47 = tpu.matmul %46, %3, %cst_18 {dimension_numbers = #tpu.dot_dimension_numbers<[1], [0], [0], [1], [0, 0, 1, 1], [], []>} : vector<224x32xf32>, vector<32x32xf32>, vector<224x32xf32> -> vector<224x32xf32>
    %48 = arith.addf %22, %47 : vector<224x32xf32>
    %49 = vector.broadcast %10 : vector<1x32xf32> to vector<224x32xf32>
    %50 = arith.addf %48, %49 : vector<224x32xf32>
    %51 = vector.extract_strided_slice %50 {offsets = [0, 0], sizes = [32, 32], strides = [1, 1]} : vector<224x32xf32> to vector<32x32xf32>
    %52 = vector.extract_strided_slice %50 {offsets = [32, 0], sizes = [32, 32], strides = [1, 1]} : vector<224x32xf32> to vector<32x32xf32>
    %53 = vector.extract_strided_slice %50 {offsets = [64, 0], sizes = [32, 32], strides = [1, 1]} : vector<224x32xf32> to vector<32x32xf32>
    %54 = arith.addf %52, %53 : vector<32x32xf32>
    %55 = vector.extract_strided_slice %50 {offsets = [96, 0], sizes = [32, 32], strides = [1, 1]} : vector<224x32xf32> to vector<32x32xf32>
    %56 = arith.addf %54, %55 : vector<32x32xf32>
    %57 = vector.extract_strided_slice %50 {offsets = [128, 0], sizes = [32, 32], strides = [1, 1]} : vector<224x32xf32> to vector<32x32xf32>
    %58 = arith.addf %56, %57 : vector<32x32xf32>
    %59 = vector.extract_strided_slice %50 {offsets = [160, 0], sizes = [32, 32], strides = [1, 1]} : vector<224x32xf32> to vector<32x32xf32>
    %60 = arith.addf %58, %59 : vector<32x32xf32>
    %61 = vector.extract_strided_slice %50 {offsets = [192, 0], sizes = [32, 32], strides = [1, 1]} : vector<224x32xf32> to vector<32x32xf32>
    %62 = arith.addf %60, %61 : vector<32x32xf32>
    %cst_19 = arith.constant 0.166666672 : f32
    %63 = vector.broadcast %cst_19 : f32 to vector<32x32xf32>
    %64 = arith.mulf %62, %63 : vector<32x32xf32>
    %65 = tpu.concatenate %23, %51, %51, %51, %51, %51, %51 in 0 : vector<32x32xf32>, vector<32x32xf32>, vector<32x32xf32>, vector<32x32xf32>, vector<32x32xf32>, vector<32x32xf32>, vector<32x32xf32> -> vector<224x32xf32>
    %66 = tpu.concatenate %64, %24 in 0 : vector<32x32xf32>, vector<192x32xf32> -> vector<224x32xf32>
    %67 = tpu.concatenate %50, %65, %66 in 1 : vector<224x32xf32>, vector<224x32xf32>, vector<224x32xf32> -> vector<224x96xf32>
    %cst_20 = arith.constant dense<0.000000e+00> : vector<224x32xf32>
    %68 = tpu.matmul %67, %2, %cst_20 {dimension_numbers = #tpu.dot_dimension_numbers<[1], [0], [0], [1], [0, 0, 1, 1], [], []>} : vector<224x96xf32>, vector<96x32xf32>, vector<224x32xf32> -> vector<224x32xf32>
    %69 = vector.broadcast %9 : vector<1x32xf32> to vector<224x32xf32>
    %70 = arith.addf %68, %69 : vector<224x32xf32>
    %cst_21 = arith.constant 0.000000e+00 : f32
    %71 = vector.broadcast %cst_21 : f32 to vector<224x32xf32>
    %72 = arith.maximumf %70, %71 : vector<224x32xf32>
    %cst_22 = arith.constant dense<0.000000e+00> : vector<224x32xf32>
    %73 = tpu.matmul %72, %3, %cst_22 {dimension_numbers = #tpu.dot_dimension_numbers<[1], [0], [0], [1], [0, 0, 1, 1], [], []>} : vector<224x32xf32>, vector<32x32xf32>, vector<224x32xf32> -> vector<224x32xf32>
    %74 = arith.addf %50, %73 : vector<224x32xf32>
    %75 = vector.broadcast %10 : vector<1x32xf32> to vector<224x32xf32>
    %76 = arith.addf %74, %75 : vector<224x32xf32>
    %cst_23 = arith.constant dense<0.000000e+00> : vector<224x32xf32>
    %77 = tpu.matmul %76, %4, %cst_23 {dimension_numbers = #tpu.dot_dimension_numbers<[1], [0], [0], [1], [0, 0, 1, 1], [], []>} : vector<224x32xf32>, vector<32x32xf32>, vector<224x32xf32> -> vector<224x32xf32>
    %78 = vector.broadcast %11 : vector<1x32xf32> to vector<224x32xf32>
    %79 = arith.addf %77, %78 : vector<224x32xf32>
    %cst_24 = arith.constant 0.000000e+00 : f32
    %80 = vector.broadcast %cst_24 : f32 to vector<224x32xf32>
    %81 = arith.maximumf %79, %80 : vector<224x32xf32>
    %cst_25 = arith.constant dense<0.000000e+00> : vector<224x1xf32>
    %82 = tpu.matmul %81, %5, %cst_25 {dimension_numbers = #tpu.dot_dimension_numbers<[1], [0], [0], [1], [0, 0, 1, 1], [], []>} : vector<224x32xf32>, vector<32x1xf32>, vector<224x1xf32> -> vector<224x1xf32>
    %83 = vector.broadcast %12 : vector<1x1xf32> to vector<224x1xf32>
    %84 = arith.addf %82, %83 : vector<224x1xf32>
    %85 = vector.extract_strided_slice %84 {offsets = [0, 0], sizes = [32, 1], strides = [1, 1]} : vector<224x1xf32> to vector<32x1xf32>
    %86 = vector.extract_strided_slice %84 {offsets = [32, 0], sizes = [32, 1], strides = [1, 1]} : vector<224x1xf32> to vector<32x1xf32>
    %87 = vector.extract_strided_slice %84 {offsets = [64, 0], sizes = [32, 1], strides = [1, 1]} : vector<224x1xf32> to vector<32x1xf32>
    %88 = arith.addf %86, %87 : vector<32x1xf32>
    %89 = vector.extract_strided_slice %84 {offsets = [96, 0], sizes = [32, 1], strides = [1, 1]} : vector<224x1xf32> to vector<32x1xf32>
    %90 = arith.addf %88, %89 : vector<32x1xf32>
    %91 = vector.extract_strided_slice %84 {offsets = [128, 0], sizes = [32, 1], strides = [1, 1]} : vector<224x1xf32> to vector<32x1xf32>
    %92 = arith.addf %90, %91 : vector<32x1xf32>
    %93 = vector.extract_strided_slice %84 {offsets = [160, 0], sizes = [32, 1], strides = [1, 1]} : vector<224x1xf32> to vector<32x1xf32>
    %94 = arith.addf %92, %93 : vector<32x1xf32>
    %95 = vector.extract_strided_slice %84 {offsets = [192, 0], sizes = [32, 1], strides = [1, 1]} : vector<224x1xf32> to vector<32x1xf32>
    %96 = arith.addf %94, %95 : vector<32x1xf32>
    %cst_26 = arith.constant 1.000000e-15 : f32
    %97 = vector.broadcast %cst_26 : f32 to vector<32x1xf32>
    %98 = arith.addf %96, %97 : vector<32x1xf32>
    %99 = tpu.reciprocal %98 {approx = true} : vector<32x1xf32> -> vector<32x1xf32>
    %100 = arith.mulf %98, %99 : vector<32x1xf32>
    %cst_27 = arith.constant 2.000000e+00 : f32
    %101 = vector.broadcast %cst_27 : f32 to vector<32x1xf32>
    %102 = arith.subf %101, %100 : vector<32x1xf32>
    %103 = arith.mulf %99, %102 : vector<32x1xf32>
    %c0_28 = arith.constant 0 : index
    %c0_29 = arith.constant 0 : index
    %104 = vector.load %arg2[%c0_28, %c0_29] : memref<32x1xf32, #tpu.memory_space<vmem>>, vector<32x1xf32>
    %105 = arith.mulf %104, %103 : vector<32x1xf32>
    %cst_30 = arith.constant 1.000000e+00 : f32
    %106 = vector.broadcast %cst_30 : f32 to vector<32x1xf32>
    %107 = arith.minimumf %105, %106 : vector<32x1xf32>
    %108 = tpu.iota {dimensions = array<i32: 1>} : vector<1x128xi32>
    %c0_i32 = arith.constant 0 : i32
    %109 = vector.broadcast %c0_i32 : i32 to vector<1x128xi32>
    %110 = arith.cmpi eq, %108, %109 : vector<1x128xi32>
    %cst_31 = arith.constant 0.000000e+00 : f32
    %111 = vector.shape_cast %110 : vector<1x128xi1> to vector<1x128xi1>
    %112 = vector.broadcast %111 : vector<1x128xi1> to vector<32x128xi1>
    %113 = vector.shape_cast %85 : vector<32x1xf32> to vector<32x1xf32>
    %114 = vector.broadcast %113 : vector<32x1xf32> to vector<32x128xf32>
    %115 = vector.broadcast %cst_31 : f32 to vector<32x128xf32>
    %116 = arith.select %112, %114, %115 : vector<32x128xi1>, vector<32x128xf32>
    %c1_i32 = arith.constant 1 : i32
    %117 = vector.broadcast %c1_i32 : i32 to vector<1x128xi32>
    %118 = arith.cmpi eq, %108, %117 : vector<1x128xi32>
    %119 = vector.extract_strided_slice %84 {offsets = [32, 0], sizes = [32, 1], strides = [1, 1]} : vector<224x1xf32> to vector<32x1xf32>
    %120 = arith.mulf %119, %107 : vector<32x1xf32>
    %cst_32 = arith.constant 0.000000e+00 : f32
    %121 = vector.shape_cast %118 : vector<1x128xi1> to vector<1x128xi1>
    %122 = vector.broadcast %121 : vector<1x128xi1> to vector<32x128xi1>
    %123 = vector.shape_cast %120 : vector<32x1xf32> to vector<32x1xf32>
    %124 = vector.broadcast %123 : vector<32x1xf32> to vector<32x128xf32>
    %125 = vector.broadcast %cst_32 : f32 to vector<32x128xf32>
    %126 = arith.select %122, %124, %125 : vector<32x128xi1>, vector<32x128xf32>
    %127 = arith.addf %116, %126 : vector<32x128xf32>
    %c2_i32 = arith.constant 2 : i32
    %128 = vector.broadcast %c2_i32 : i32 to vector<1x128xi32>
    %129 = arith.cmpi eq, %108, %128 : vector<1x128xi32>
    %130 = vector.extract_strided_slice %84 {offsets = [64, 0], sizes = [32, 1], strides = [1, 1]} : vector<224x1xf32> to vector<32x1xf32>
    %131 = arith.mulf %130, %107 : vector<32x1xf32>
    %cst_33 = arith.constant 0.000000e+00 : f32
    %132 = vector.shape_cast %129 : vector<1x128xi1> to vector<1x128xi1>
    %133 = vector.broadcast %132 : vector<1x128xi1> to vector<32x128xi1>
    %134 = vector.shape_cast %131 : vector<32x1xf32> to vector<32x1xf32>
    %135 = vector.broadcast %134 : vector<32x1xf32> to vector<32x128xf32>
    %136 = vector.broadcast %cst_33 : f32 to vector<32x128xf32>
    %137 = arith.select %133, %135, %136 : vector<32x128xi1>, vector<32x128xf32>
    %138 = arith.addf %127, %137 : vector<32x128xf32>
    %c3_i32 = arith.constant 3 : i32
    %139 = vector.broadcast %c3_i32 : i32 to vector<1x128xi32>
    %140 = arith.cmpi eq, %108, %139 : vector<1x128xi32>
    %141 = vector.extract_strided_slice %84 {offsets = [96, 0], sizes = [32, 1], strides = [1, 1]} : vector<224x1xf32> to vector<32x1xf32>
    %142 = arith.mulf %141, %107 : vector<32x1xf32>
    %cst_34 = arith.constant 0.000000e+00 : f32
    %143 = vector.shape_cast %140 : vector<1x128xi1> to vector<1x128xi1>
    %144 = vector.broadcast %143 : vector<1x128xi1> to vector<32x128xi1>
    %145 = vector.shape_cast %142 : vector<32x1xf32> to vector<32x1xf32>
    %146 = vector.broadcast %145 : vector<32x1xf32> to vector<32x128xf32>
    %147 = vector.broadcast %cst_34 : f32 to vector<32x128xf32>
    %148 = arith.select %144, %146, %147 : vector<32x128xi1>, vector<32x128xf32>
    %149 = arith.addf %138, %148 : vector<32x128xf32>
    %c4_i32 = arith.constant 4 : i32
    %150 = vector.broadcast %c4_i32 : i32 to vector<1x128xi32>
    %151 = arith.cmpi eq, %108, %150 : vector<1x128xi32>
    %152 = vector.extract_strided_slice %84 {offsets = [128, 0], sizes = [32, 1], strides = [1, 1]} : vector<224x1xf32> to vector<32x1xf32>
    %153 = arith.mulf %152, %107 : vector<32x1xf32>
    %cst_35 = arith.constant 0.000000e+00 : f32
    %154 = vector.shape_cast %151 : vector<1x128xi1> to vector<1x128xi1>
    %155 = vector.broadcast %154 : vector<1x128xi1> to vector<32x128xi1>
    %156 = vector.shape_cast %153 : vector<32x1xf32> to vector<32x1xf32>
    %157 = vector.broadcast %156 : vector<32x1xf32> to vector<32x128xf32>
    %158 = vector.broadcast %cst_35 : f32 to vector<32x128xf32>
    %159 = arith.select %155, %157, %158 : vector<32x128xi1>, vector<32x128xf32>
    %160 = arith.addf %149, %159 : vector<32x128xf32>
    %c5_i32 = arith.constant 5 : i32
    %161 = vector.broadcast %c5_i32 : i32 to vector<1x128xi32>
    %162 = arith.cmpi eq, %108, %161 : vector<1x128xi32>
    %163 = vector.extract_strided_slice %84 {offsets = [160, 0], sizes = [32, 1], strides = [1, 1]} : vector<224x1xf32> to vector<32x1xf32>
    %164 = arith.mulf %163, %107 : vector<32x1xf32>
    %cst_36 = arith.constant 0.000000e+00 : f32
    %165 = vector.shape_cast %162 : vector<1x128xi1> to vector<1x128xi1>
    %166 = vector.broadcast %165 : vector<1x128xi1> to vector<32x128xi1>
    %167 = vector.shape_cast %164 : vector<32x1xf32> to vector<32x1xf32>
    %168 = vector.broadcast %167 : vector<32x1xf32> to vector<32x128xf32>
    %169 = vector.broadcast %cst_36 : f32 to vector<32x128xf32>
    %170 = arith.select %166, %168, %169 : vector<32x128xi1>, vector<32x128xf32>
    %171 = arith.addf %160, %170 : vector<32x128xf32>
    %c6_i32 = arith.constant 6 : i32
    %172 = vector.broadcast %c6_i32 : i32 to vector<1x128xi32>
    %173 = arith.cmpi eq, %108, %172 : vector<1x128xi32>
    %174 = vector.extract_strided_slice %84 {offsets = [192, 0], sizes = [32, 1], strides = [1, 1]} : vector<224x1xf32> to vector<32x1xf32>
    %175 = arith.mulf %174, %107 : vector<32x1xf32>
    %cst_37 = arith.constant 0.000000e+00 : f32
    %176 = vector.shape_cast %173 : vector<1x128xi1> to vector<1x128xi1>
    %177 = vector.broadcast %176 : vector<1x128xi1> to vector<32x128xi1>
    %178 = vector.shape_cast %175 : vector<32x1xf32> to vector<32x1xf32>
    %179 = vector.broadcast %178 : vector<32x1xf32> to vector<32x128xf32>
    %180 = vector.broadcast %cst_37 : f32 to vector<32x128xf32>
    %181 = arith.select %177, %179, %180 : vector<32x128xi1>, vector<32x128xf32>
    %182 = arith.addf %171, %181 : vector<32x128xf32>
    %c0_38 = arith.constant 0 : index
    %c0_39 = arith.constant 0 : index
    %183 = vector.load %arg5[%c0_38, %c0_39] : memref<32x128xf32, #tpu.memory_space<vmem>>, vector<32x128xf32>
    tpu.vector_store %arg5[%c0_38, %c0_39], %182 {strides = array<i32>} : memref<32x128xf32, #tpu.memory_space<vmem>>, vector<32x128xf32>,
    return
  }
  func.func @transform_0(%arg0: i32) -> (i32, i32, i32) {
    %c0_i32 = arith.constant 0 : i32
    %c0_i32_0 = arith.constant 0 : i32
    %c0_i32_1 = arith.constant 0 : i32
    return %arg0, %c0_i32, %c0_i32_0 : i32, i32, i32
  }
  func.func @transform_1(%arg0: i32) -> (i32, i32) {
    %c0_i32 = arith.constant 0 : i32
    %c0_i32_0 = arith.constant 0 : i32
    return %arg0, %c0_i32 : i32, i32
  }
  func.func @transform_2(%arg0: i32) -> (i32, i32) {
    %c0_i32 = arith.constant 0 : i32
    %c0_i32_0 = arith.constant 0 : i32
    %c0_i32_1 = arith.constant 0 : i32
    return %c0_i32, %c0_i32_0 : i32, i32
  }
  func.func @transform_3(%arg0: i32) -> (i32, i32) {
    %c0_i32 = arith.constant 0 : i32
    %c0_i32_0 = arith.constant 0 : i32
    %c0_i32_1 = arith.constant 0 : i32
    return %c0_i32, %c0_i32_0 : i32, i32
  }
  func.func @transform_4(%arg0: i32) -> (i32, i32) {
    %c0_i32 = arith.constant 0 : i32
    %c0_i32_0 = arith.constant 0 : i32
    return %arg0, %c0_i32 : i32, i32
  }
}

</mosaic_0001>

<llo_original>
// kernel: tpu_custom_call.1
$region0: #{tpu_custom_call.1}
  #allocation0 [shape = 'u32[]', space=smem, size = 0x4, offset = 0x4, fixed_abs, tag = 'smem constant byte address 0x4 - core index']
  #allocation1 [shape = 'u32[72,128]{1,0:T(1,128)}', space=vmem, size = 0x9000, scoped, tag = 'internal scratch']
  %s0 = inlined_call_operand.vmem [shape: f32[2,224,16], index: 0, kind: input, shape index: {}]
  %s1 = inlined_call_operand.vmem [shape: f32[64,1], index: 1, kind: input, shape index: {}]
  %s2 = inlined_call_operand.vmem [shape: f32[240,32], index: 2, kind: input, shape index: {}]
  %s3 = inlined_call_operand.vmem [shape: f32[6,32], index: 3, kind: input, shape index: {}]
  %s4 = inlined_call_operand.hbm [shape: f32[64,128], index: 4, kind: output, shape index: {}]
  %s5 = sld [smem:[#allocation0]]
  $region49: #{tpu_custom_call.1} parent=0
    _
  %s7 = ssub.s32 1, %s5
  %s8 = scalar_select 0, %s7, %s5
  $region1: #{tpu_custom_call.1} parent=0
    #allocation2 [shape = 'u8[32768]{0}', space=vmem, size = 0x8000, scoped, tag = 'output window, operand 0']
    #allocation3 [shape = 's32[2]{0}', space=sflag, size = 0x8, scoped, tag = 'scoped memory for tpu_custom_call.1']
    %9 = vsyncpa [#allocation3], 0
    %s10 = scalar_lea.sflag [#allocation3], 1
    %11 = vsyncpa %s10, 0
    loop: start=0, step=1, limit=4
    $region2: #{tpu_custom_call.1} parent=1 // loop_pre_header
      _
    $region3: #{tpu_custom_call.1} parent=1 // loop_header
      %s13 = sphi 0, %s17
      %p14 = scmp.ge.s32.totalorder %s13, 4
      %s23 = sphi 0, %s25
      %s26 = sphi 0, %s23
      %s27 = sphi 0, %s26
      %s43 = sphi 0, %s27
      %s49 = sphi 0, %s51
      %s52 = sphi 0, %s49
      %s53 = sphi 0, %s52
      %s69 = sphi 0, %s53
      %s73 = sphi 0, %s73
      %s75 = sphi 0, %s73
      %s76 = sphi 0, %s75
      %s90 = sphi 0, %s76
      %s94 = sphi 0, %s94
      %s96 = sphi 0, %s94
      %s97 = sphi 0, %s96
      %s111 = sphi 0, %s97
      %s117 = sphi 0, %s119
      %s120 = sphi 0, %s117
      %s121 = sphi 0, %s120
      %s137 = sphi 0, %s121
    $region4: #{tpu_custom_call.1} parent=1 // loop_header_branch
      %16 = sbr.rel (%p14) target = $region8
    $region5: #{tpu_custom_call.1} parent=1 // loop_body
      %s18 = ssub.s32 %s13, 1
      %s19 = ssub.s32 %s13, 2
      %s20 = sadd.s32 %s13, 1
      %s21 = ssub.s32 %s13, %s20
      %p22 = scmp.eq.s32.totalorder %s21, 0
      %s24 = sadd.s32 %s23, 1
      %s25 = scalar_select %p22, %s23, %s24
      %p28 = pneg %p22
      %p29 = scmp.eq.s32.totalorder %s13, 1
      %p30 = por %p28, %p29
      %p31 = scmp.ne.s32.totalorder %s23, %s26
      %p32 = scmp.eq.s32.totalorder %s13, 0
      %p33 = por %p31, %p32
      %p34 = scmp.ne.s32.totalorder %s23, %s26
      %p35 = scmp.eq.s32.totalorder %s18, 1
      %p36 = por %p34, %p35
      %p37 = scmp.ne.s32.totalorder %s26, %s27
      %p38 = scmp.eq.s32.totalorder %s18, 0
      %p39 = por %p37, %p38
      %p40 = scmp.ne.s32.totalorder %s26, %s27
      %p41 = scmp.eq.s32.totalorder %s19, 1
      %p42 = por %p40, %p41
      %p44 = scmp.ne.s32.totalorder %s27, %s43
      %p45 = scmp.eq.s32.totalorder %s19, 0
      %p46 = por %p44, %p45
      %s47 = ssub.s32 %s13, %s20
      %p48 = scmp.eq.s32.totalorder %s47, 0
      %s50 = sadd.s32 %s49, 1
      %s51 = scalar_select %p48, %s49, %s50
      %p54 = pneg %p48
      %p55 = scmp.eq.s32.totalorder %s13, 1
      %p56 = por %p54, %p55
      %p57 = scmp.ne.s32.totalorder %s49, %s52
      %p58 = scmp.eq.s32.totalorder %s13, 0
      %p59 = por %p57, %p58
      %p60 = scmp.ne.s32.totalorder %s49, %s52
      %p61 = scmp.eq.s32.totalorder %s18, 1
      %p62 = por %p60, %p61
      %p63 = scmp.ne.s32.totalorder %s52, %s53
      %p64 = scmp.eq.s32.totalorder %s18, 0
      %p65 = por %p63, %p64
      %p66 = scmp.ne.s32.totalorder %s52, %s53
      %p67 = scmp.eq.s32.totalorder %s19, 1
      %p68 = por %p66, %p67
      %p70 = scmp.ne.s32.totalorder %s53, %s69
      %p71 = scmp.eq.s32.totalorder %s19, 0
      %p72 = por %p70, %p71
      %s74 = sadd.s32 %s73, 1
      %p77 = scmp.eq.s32.totalorder %s13, 1
      %p78 = scmp.ne.s32.totalorder %s73, %s75
      %p79 = scmp.eq.s32.totalorder %s13, 0
      %p80 = por %p78, %p79
      %p81 = scmp.ne.s32.totalorder %s73, %s75
      %p82 = scmp.eq.s32.totalorder %s18, 1
      %p83 = por %p81, %p82
      %p84 = scmp.ne.s32.totalorder %s75, %s76
      %p85 = scmp.eq.s32.totalorder %s18, 0
      %p86 = por %p84, %p85
      %p87 = scmp.ne.s32.totalorder %s75, %s76
      %p88 = scmp.eq.s32.totalorder %s19, 1
      %p89 = por %p87, %p88
      %p91 = scmp.ne.s32.totalorder %s76, %s90
      %p92 = scmp.eq.s32.totalorder %s19, 0
      %p93 = por %p91, %p92
      %s95 = sadd.s32 %s94, 1
      %p98 = scmp.eq.s32.totalorder %s13, 1
      %p99 = scmp.ne.s32.totalorder %s94, %s96
      %p100 = scmp.eq.s32.totalorder %s13, 0
      %p101 = por %p99, %p100
      %p102 = scmp.ne.s32.totalorder %s94, %s96
      %p103 = scmp.eq.s32.totalorder %s18, 1
      %p104 = por %p102, %p103
      %p105 = scmp.ne.s32.totalorder %s96, %s97
      %p106 = scmp.eq.s32.totalorder %s18, 0
      %p107 = por %p105, %p106
      %p108 = scmp.ne.s32.totalorder %s96, %s97
      %p109 = scmp.eq.s32.totalorder %s19, 1
      %p110 = por %p108, %p109
      %p112 = scmp.ne.s32.totalorder %s97, %s111
      %p113 = scmp.eq.s32.totalorder %s19, 0
      %p114 = por %p112, %p113
      %s115 = ssub.s32 %s13, %s20
      %p116 = scmp.eq.s32.totalorder %s115, 0
      %s118 = sadd.s32 %s117, 1
      %s119 = scalar_select %p116, %s117, %s118
      %p122 = pneg %p116
      %p123 = scmp.eq.s32.totalorder %s13, 1
      %p124 = por %p122, %p123
      %p125 = scmp.ne.s32.totalorder %s117, %s120
      %p126 = scmp.eq.s32.totalorder %s13, 0
      %p127 = por %p125, %p126
      %p128 = scmp.ne.s32.totalorder %s117, %s120
      %p129 = scmp.eq.s32.totalorder %s18, 1
      %p130 = por %p128, %p129
      %p131 = scmp.ne.s32.totalorder %s120, %s121
      %p132 = scmp.eq.s32.totalorder %s18, 0
      %p133 = por %p131, %p132
      %p134 = scmp.ne.s32.totalorder %s120, %s121
      %p135 = scmp.eq.s32.totalorder %s19, 1
      %p136 = por %p134, %p135
      %p138 = scmp.ne.s32.totalorder %s121, %s137
      %p139 = scmp.eq.s32.totalorder %s19, 0
      %p140 = por %p138, %p139
      %p141 = scmp.le.s32.totalorder 1, %s13
      %p142 = scmp.lt.s32.totalorder %s13, 3
      %p143 = pnand %p141, %p142
      %p144 = pneg %p143
      // Predicated region
      $region9: #{tpu_custom_call.1} parent=5 // pred_check
        _
      $region10: #{tpu_custom_call.1} parent=5 // pred_check_branch
        %146 = sbr.rel (%p143) target = $region12
      $region11: #{tpu_custom_call.1} parent=5 // pred_region
        %s147 = ssub.s32 %s13, 1
        // Predicated region
        $region13: #{tpu_custom_call.1} parent=11 // pred_check
          %p148 = pneg %p86
        $region14: #{tpu_custom_call.1} parent=11 // pred_check_branch
          %150 = sbr.rel (%p148) target = $region16
        $region15: #{tpu_custom_call.1} parent=11 // pred_region
          _
        $region16: #{tpu_custom_call.1} parent=11 // pred_fallthru
          _
        // Predicated region
        $region17: #{tpu_custom_call.1} parent=11 // pred_check
          %p151 = pneg %p107
        $region18: #{tpu_custom_call.1} parent=11 // pred_check_branch
          %153 = sbr.rel (%p151) target = $region20
        $region19: #{tpu_custom_call.1} parent=11 // pred_region
          _
        $region20: #{tpu_custom_call.1} parent=11 // pred_fallthru
          _
      $region12: #{tpu_custom_call.1} parent=5 // pred_fallthru
        _
      %p154 = scmp.lt.s32.totalorder %s13, 2
      // Predicated region
      $region21: #{tpu_custom_call.1} parent=5 // pred_check
        %p155 = pneg %p154
      $region22: #{tpu_custom_call.1} parent=5 // pred_check_branch
        %157 = sbr.rel (%p155) target = $region24
      $region23: #{tpu_custom_call.1} parent=5 // pred_region
        // Predicated region
        $region25: #{tpu_custom_call.1} parent=23 // pred_check
          %p158 = pneg %p33
        $region26: #{tpu_custom_call.1} parent=23 // pred_check_branch
          %160 = sbr.rel (%p158) target = $region28
        $region27: #{tpu_custom_call.1} parent=23 // pred_region
          %p161 = scmp.lt.s32.totalorder %s13, 1
          %s162 = scalar_select %p161, %s13, 1
          %s163 = smul.addr %s162, 28
          %s164 = smul.addr %s163, 8
          %s165 = scalar_lea.vmem %s0, %s164
        $region28: #{tpu_custom_call.1} parent=23 // pred_fallthru
          _
        // Predicated region
        $region29: #{tpu_custom_call.1} parent=23 // pred_check
          %p166 = pneg %p59
        $region30: #{tpu_custom_call.1} parent=23 // pred_check_branch
          %168 = sbr.rel (%p166) target = $region32
        $region31: #{tpu_custom_call.1} parent=23 // pred_region
          %s169 = smul.u32 4, %s13
          %p170 = scmp.lt.s32.totalorder %s169, 7
          %s171 = scalar_select %p170, %s169, 7
          %s172 = smul.addr %s171, 8
          %s173 = scalar_lea.vmem %s1, %s172
          %s174 = smul.u32 4, %s13
        $region32: #{tpu_custom_call.1} parent=23 // pred_fallthru
          _
      $region24: #{tpu_custom_call.1} parent=5 // pred_fallthru
        _
      %p175 = scmp.le.s32.totalorder 1, %s13
      %p176 = scmp.lt.s32.totalorder %s13, 3
      %p177 = pnand %p175, %p176
      %p178 = pneg %p177
      // Predicated region
      $region33: #{tpu_custom_call.1} parent=5 // pred_check
        _
      $region34: #{tpu_custom_call.1} parent=5 // pred_check_branch
        %180 = sbr.rel (%p177) target = $region36
      $region35: #{tpu_custom_call.1} parent=5 // pred_region
        %s181 = ssub.s32 %s13, 1
        %p182 = scmp.lt.s32.totalorder %s18, 1
        %s183 = scalar_select %p182, %s18, 1
        %s184 = smul.addr %s183, 28
        %s185 = smul.addr %s184, 8
        %s186 = scalar_lea.vmem %s0, %s185
        %p187 = pneg %p39
        %p188 = pneg %p36
        %s189 = smul.u32 4, %s18
        %p190 = scmp.lt.s32.totalorder %s189, 7
        %s191 = scalar_select %p190, %s189, 7
        %s192 = smul.addr %s191, 8
        %s193 = scalar_lea.vmem %s1, %s192
        %p194 = pneg %p65
        %p195 = pneg %p62
        %p196 = pneg %p86
        %p197 = pneg %p83
        %p198 = pneg %p107
        %p199 = pneg %p104
        %p200 = pneg %p133
        %p201 = pneg %p130
        %s202 = sand.u32 %s120, 1
        %s203 = scalar_lea.sflag [#allocation3], %s202
        %s204 = sand.u32 %s120, 1
        %s205 = smul.addr %s204, 32
        %s206 = scalar_lea.vmem [#allocation2], %s205
        %p207 = scmp.lt.s32.totalorder %s18, 1
        %s208 = scalar_select %p207, %s18, 1
        %s209 = smul.addr %s208, 28
        %s210 = smul.addr %s209, 8
        %s211 = scalar_lea.vmem %s0, %s210
        %s212 = smul.u32 4, %s18
        %p213 = scmp.lt.s32.totalorder %s212, 7
        %s214 = scalar_select %p213, %s212, 7
        %s215 = smul.addr %s214, 8
        %s216 = scalar_lea.vmem %s1, %s215
        %s217 = smul.u32 4, %s18
        %s218 = smul.u32 4, %s18
        %v219 = vld [vmem:[%s2] sm:$0xff]
        %v220 = vld [vmem:[%s2 + $0x8] sm:$0xff]
        %v221 = vld [vmem:[%s2 + $0x10] sm:$0xff]
        %v222 = vld [vmem:[%s2 + $0x18] sm:$0xff]
        %v223 = vld [vmem:[%s2 + $0x20] sm:$0xff]
        %v224 = vld [vmem:[%s2 + $0x28] sm:$0xff]
        %v225 = vld [vmem:[%s2 + $0x30] sm:$0xff]
        %v226 = vld [vmem:[%s2 + $0x38] sm:$0xff]
        %v227 = vld [vmem:[%s2 + $0x40] sm:$0xff]
        %v228 = vld [vmem:[%s2 + $0x48] sm:$0xff]
        %v229 = vld [vmem:[%s2 + $0x50] sm:$0xff]
        %v230 = vld [vmem:[%s2 + $0x58] sm:$0xff]
        %v231 = vld [vmem:[%s2 + $0x60] sm:$0xff]
        %v232 = vld [vmem:[%s2 + $0x68] sm:$0xff]
        %v233 = vld [vmem:[%s2 + $0x70] sm:$0xff]
        %v234 = vld [vmem:[%s2 + $0x78] sm:$0xff]
        %v235 = vld [vmem:[%s2 + $0x80] sm:$0xff]
        %v236 = vld [vmem:[%s2 + $0x88] sm:$0xff]
        %v237 = vld [vmem:[%s2 + $0x90] sm:$0xff]
        %v238 = vld [vmem:[%s2 + $0x98] sm:$0xff]
        %v239 = vld [vmem:[%s2 + $0xa0] sm:$0xff]
        %v240 = vld [vmem:[%s2 + $0xa8] sm:$0xff]
        %v241 = vld [vmem:[%s2 + $0xb0] sm:$0xff]
        %v242 = vld [vmem:[%s2 + $0xb8] sm:$0xff]
        %v243 = vld [vmem:[%s2 + $0xc0] sm:$0xff]
        %v244 = vld [vmem:[%s2 + $0xc8] sm:$0xff]
        %v245 = vld [vmem:[%s2 + $0xd0] sm:$0xff]
        %v246 = vld [vmem:[%s2 + $0xd8] sm:$0xff]
        %v247 = vld [vmem:[%s2 + $0xe0] sm:$0xff]
        %v248 = vld [vmem:[%s2 + $0xe8] sm:$0xff]
        %v249 = vld [vmem:[%s3] sm:$0x3f]
        %v250 = vld [vmem:[%s211] sm:$0xff]
        %v251 = vld [vmem:[%s211 + $0x8] sm:$0xff]
        %v252 = vld [vmem:[%s211 + $0x10] sm:$0xff]
        %v253 = vld [vmem:[%s211 + $0x18] sm:$0xff]
        %v254 = vld [vmem:[%s211 + $0x20] sm:$0xff]
        %v255 = vld [vmem:[%s211 + $0x28] sm:$0xff]
        %v256 = vld [vmem:[%s211 + $0x30] sm:$0xff]
        %v257 = vld [vmem:[%s211 + $0x38] sm:$0xff]
        %v258 = vld [vmem:[%s211 + $0x40] sm:$0xff]
        %v259 = vld [vmem:[%s211 + $0x48] sm:$0xff]
        %v260 = vld [vmem:[%s211 + $0x50] sm:$0xff]
        %v261 = vld [vmem:[%s211 + $0x58] sm:$0xff]
        %v262 = vld [vmem:[%s211 + $0x60] sm:$0xff]
        %v263 = vld [vmem:[%s211 + $0x68] sm:$0xff]
        %v264 = vld [vmem:[%s211 + $0x70] sm:$0xff]
        %v265 = vld [vmem:[%s211 + $0x78] sm:$0xff]
        %v266 = vld [vmem:[%s211 + $0x80] sm:$0xff]
        %v267 = vld [vmem:[%s211 + $0x88] sm:$0xff]
        %v268 = vld [vmem:[%s211 + $0x90] sm:$0xff]
        %v269 = vld [vmem:[%s211 + $0x98] sm:$0xff]
        %v270 = vld [vmem:[%s211 + $0xa0] sm:$0xff]
        %v271 = vld [vmem:[%s211 + $0xa8] sm:$0xff]
        %v272 = vld [vmem:[%s211 + $0xb0] sm:$0xff]
        %v273 = vld [vmem:[%s211 + $0xb8] sm:$0xff]
        %v274 = vld [vmem:[%s211 + $0xc0] sm:$0xff]
        %v275 = vld [vmem:[%s211 + $0xc8] sm:$0xff]
        %v276 = vld [vmem:[%s211 + $0xd0] sm:$0xff]
        %v277 = vld [vmem:[%s211 + $0xd8] sm:$0xff]
        %v278 = vperm.slane %v249, 0
        %vm279 = vcmask 130048
        %v281 = vsel %vm279, %v250, 0
        %v284 = vsel %vm279, %v251, 0
        %v287 = vsel %vm279, %v252, 0
        %v290 = vsel %vm279, %v253, 0
        %v293 = vsel %vm279, %v254, 0
        %v296 = vsel %vm279, %v255, 0
        %v299 = vsel %vm279, %v256, 0
        %v302 = vsel %vm279, %v257, 0
        %v305 = vsel %vm279, %v258, 0
        %v308 = vsel %vm279, %v259, 0
        %v311 = vsel %vm279, %v260, 0
        %v314 = vsel %vm279, %v261, 0
        %v317 = vsel %vm279, %v262, 0
        %v320 = vsel %vm279, %v263, 0
        %v323 = vsel %vm279, %v264, 0
        %v326 = vsel %vm279, %v265, 0
        %v329 = vsel %vm279, %v266, 0
        %v332 = vsel %vm279, %v267, 0
        %v335 = vsel %vm279, %v268, 0
        %v338 = vsel %vm279, %v269, 0
        %v341 = vsel %vm279, %v270, 0
        %v344 = vsel %vm279, %v271, 0
        %v347 = vsel %vm279, %v272, 0
        %v350 = vsel %vm279, %v273, 0
        %v353 = vsel %vm279, %v274, 0
        %v356 = vsel %vm279, %v275, 0
        %v359 = vsel %vm279, %v276, 0
        %v362 = vsel %vm279, %v277, 0
        %364 = vmatpush.msra.mxu0 0.0
        %365 = vmatpush.msra.mxu0 0.0
        %366 = vmatpush.msra.mxu0 0.0
        %367 = vmatpush.msra.mxu0 0.0
        %368 = vmatpush.msra.mxu0 0.0
        %369 = vmatpush.msra.mxu0 0.0
        %370 = vmatpush.msra.mxu0 0.0
        %371 = vmatpush.msra.mxu0 0.0
        %372 = vmatpush.msra.mxu0 0.0
        %373 = vmatpush.msra.mxu0 0.0
        %374 = vmatpush.msra.mxu0 0.0
        %375 = vmatpush.msra.mxu0 0.0
        %376 = vmatpush.msra.mxu0 0.0
        %377 = vmatpush.msra.mxu0 0.0
        %378 = vmatpush.msra.mxu0 %v220
        %379 = vmatpush.msra.mxu0 %v219
        %380 = vmatmul.f32.gmra.mxu0 %v281
        %v381 = vpop.f32.mrf.mxu0
        %v382 = vadd.f32 %v278, %v381
        %383 = vmatmul.f32.gmra.mxu0 %v284
        %v384 = vpop.f32.mrf.mxu0
        %v385 = vadd.f32 %v278, %v384
        %386 = vmatmul.f32.gmra.mxu0 %v287
        %v387 = vpop.f32.mrf.mxu0
        %v388 = vadd.f32 %v278, %v387
        %389 = vmatmul.f32.gmra.mxu0 %v290
        %v390 = vpop.f32.mrf.mxu0
        %v391 = vadd.f32 %v278, %v390
        %392 = vmatmul.f32.gmra.mxu0 %v293
        %v393 = vpop.f32.mrf.mxu0
        %v394 = vadd.f32 %v278, %v393
        %395 = vmatmul.f32.gmra.mxu0 %v296
        %v396 = vpop.f32.mrf.mxu0
        %v397 = vadd.f32 %v278, %v396
        %398 = vmatmul.f32.gmra.mxu0 %v299
        %v399 = vpop.f32.mrf.mxu0
        %v400 = vadd.f32 %v278, %v399
        %401 = vmatmul.f32.gmra.mxu0 %v302
        %v402 = vpop.f32.mrf.mxu0
        %v403 = vadd.f32 %v278, %v402
        %404 = vmatmul.f32.gmra.mxu0 %v305
        %v405 = vpop.f32.mrf.mxu0
        %v406 = vadd.f32 %v278, %v405
        %407 = vmatmul.f32.gmra.mxu0 %v308
        %v408 = vpop.f32.mrf.mxu0
        %v409 = vadd.f32 %v278, %v408
        %410 = vmatmul.f32.gmra.mxu0 %v311
        %v411 = vpop.f32.mrf.mxu0
        %v412 = vadd.f32 %v278, %v411
        %413 = vmatmul.f32.gmra.mxu0 %v314
        %v414 = vpop.f32.mrf.mxu0
        %v415 = vadd.f32 %v278, %v414
        %416 = vmatmul.f32.gmra.mxu0 %v317
        %v417 = vpop.f32.mrf.mxu0
        %v418 = vadd.f32 %v278, %v417
        %419 = vmatmul.f32.gmra.mxu0 %v320
        %v420 = vpop.f32.mrf.mxu0
        %v421 = vadd.f32 %v278, %v420
        %422 = vmatmul.f32.gmra.mxu0 %v323
        %v423 = vpop.f32.mrf.mxu0
        %v424 = vadd.f32 %v278, %v423
        %425 = vmatmul.f32.gmra.mxu0 %v326
        %v426 = vpop.f32.mrf.mxu0
        %v427 = vadd.f32 %v278, %v426
        %428 = vmatmul.f32.gmra.mxu0 %v329
        %v429 = vpop.f32.mrf.mxu0
        %v430 = vadd.f32 %v278, %v429
        %431 = vmatmul.f32.gmra.mxu0 %v332
        %v432 = vpop.f32.mrf.mxu0
        %v433 = vadd.f32 %v278, %v432
        %434 = vmatmul.f32.gmra.mxu0 %v335
        %v435 = vpop.f32.mrf.mxu0
        %v436 = vadd.f32 %v278, %v435
        %437 = vmatmul.f32.gmra.mxu0 %v338
        %v438 = vpop.f32.mrf.mxu0
        %v439 = vadd.f32 %v278, %v438
        %440 = vmatmul.f32.gmra.mxu0 %v341
        %v441 = vpop.f32.mrf.mxu0
        %v442 = vadd.f32 %v278, %v441
        %443 = vmatmul.f32.gmra.mxu0 %v344
        %v444 = vpop.f32.mrf.mxu0
        %v445 = vadd.f32 %v278, %v444
        %446 = vmatmul.f32.gmra.mxu0 %v347
        %v447 = vpop.f32.mrf.mxu0
        %v448 = vadd.f32 %v278, %v447
        %449 = vmatmul.f32.gmra.mxu0 %v350
        %v450 = vpop.f32.mrf.mxu0
        %v451 = vadd.f32 %v278, %v450
        %452 = vmatmul.f32.gmra.mxu0 %v353
        %v453 = vpop.f32.mrf.mxu0
        %v454 = vadd.f32 %v278, %v453
        %455 = vmatmul.f32.gmra.mxu0 %v356
        %v456 = vpop.f32.mrf.mxu0
        %v457 = vadd.f32 %v278, %v456
        %458 = vmatmul.f32.gmra.mxu0 %v359
        %v459 = vpop.f32.mrf.mxu0
        %v460 = vadd.f32 %v278, %v459
        %461 = vmatmul.f32.gmra.mxu0 %v362
        %v462 = vpop.f32.mrf.mxu0
        %v463 = vadd.f32 %v278, %v462
        %464 = vdwg.mxu0
        %v465 = vmax.f32 %v382, 0.0
        %v466 = vmax.f32 %v385, 0.0
        %v467 = vmax.f32 %v388, 0.0
        %v468 = vmax.f32 %v391, 0.0
        %v469 = vmax.f32 %v394, 0.0
        %v470 = vmax.f32 %v397, 0.0
        %v471 = vmax.f32 %v400, 0.0
        %v472 = vmax.f32 %v403, 0.0
        %v473 = vmax.f32 %v406, 0.0
        %v474 = vmax.f32 %v409, 0.0
        %v475 = vmax.f32 %v412, 0.0
        %v476 = vmax.f32 %v415, 0.0
        %v477 = vmax.f32 %v418, 0.0
        %v478 = vmax.f32 %v421, 0.0
        %v479 = vmax.f32 %v424, 0.0
        %v480 = vmax.f32 %v427, 0.0
        %v481 = vmax.f32 %v430, 0.0
        %v482 = vmax.f32 %v433, 0.0
        %v483 = vmax.f32 %v436, 0.0
        %v484 = vmax.f32 %v439, 0.0
        %v485 = vmax.f32 %v442, 0.0
        %v486 = vmax.f32 %v445, 0.0
        %v487 = vmax.f32 %v448, 0.0
        %v488 = vmax.f32 %v451, 0.0
        %v489 = vmax.f32 %v454, 0.0
        %v490 = vmax.f32 %v457, 0.0
        %v491 = vmax.f32 %v460, 0.0
        %v492 = vmax.f32 %v463, 0.0
        %v493 = vperm.slane %v249, 1
        %vm494 = vcmask 261120
        %v496 = vsel %vm494, %v465, 0
        %v499 = vsel %vm494, %v466, 0
        %v502 = vsel %vm494, %v467, 0
        %v505 = vsel %vm494, %v468, 0
        %v508 = vsel %vm494, %v469, 0
        %v511 = vsel %vm494, %v470, 0
        %v514 = vsel %vm494, %v471, 0
        %v517 = vsel %vm494, %v472, 0
        %v520 = vsel %vm494, %v473, 0
        %v523 = vsel %vm494, %v474, 0
        %v526 = vsel %vm494, %v475, 0
        %v529 = vsel %vm494, %v476, 0
        %v532 = vsel %vm494, %v477, 0
        %v535 = vsel %vm494, %v478, 0
        %v538 = vsel %vm494, %v479, 0
        %v541 = vsel %vm494, %v480, 0
        %v544 = vsel %vm494, %v481, 0
        %v547 = vsel %vm494, %v482, 0
        %v550 = vsel %vm494, %v483, 0
        %v553 = vsel %vm494, %v484, 0
        %v556 = vsel %vm494, %v485, 0
        %v559 = vsel %vm494, %v486, 0
        %v562 = vsel %vm494, %v487, 0
        %v565 = vsel %vm494, %v488, 0
        %v568 = vsel %vm494, %v489, 0
        %v571 = vsel %vm494, %v490, 0
        %v574 = vsel %vm494, %v491, 0
        %v577 = vsel %vm494, %v492, 0
        %579 = vmatpush.msra.mxu0 0.0
        %580 = vmatpush.msra.mxu0 0.0
        %581 = vmatpush.msra.mxu0 0.0
        %582 = vmatpush.msra.mxu0 0.0
        %583 = vmatpush.msra.mxu0 0.0
        %584 = vmatpush.msra.mxu0 0.0
        %585 = vmatpush.msra.mxu0 0.0
        %586 = vmatpush.msra.mxu0 0.0
        %587 = vmatpush.msra.mxu0 0.0
        %588 = vmatpush.msra.mxu0 0.0
        %589 = vmatpush.msra.mxu0 0.0
        %590 = vmatpush.msra.mxu0 0.0
        %591 = vmatpush.msra.mxu0 %v224
        %592 = vmatpush.msra.mxu0 %v223
        %593 = vmatpush.msra.mxu0 %v222
        %594 = vmatpush.msra.mxu0 %v221
        %595 = vmatmul.f32.gmra.mxu0 %v496
        %v596 = vpop.f32.mrf.mxu0
        %v597 = vadd.f32 %v493, %v596
        %598 = vmatmul.f32.gmra.mxu0 %v499
        %v599 = vpop.f32.mrf.mxu0
        %v600 = vadd.f32 %v493, %v599
        %601 = vmatmul.f32.gmra.mxu0 %v502
        %v602 = vpop.f32.mrf.mxu0
        %v603 = vadd.f32 %v493, %v602
        %604 = vmatmul.f32.gmra.mxu0 %v505
        %v605 = vpop.f32.mrf.mxu0
        %v606 = vadd.f32 %v493, %v605
        %607 = vmatmul.f32.gmra.mxu0 %v508
        %v608 = vpop.f32.mrf.mxu0
        %v609 = vadd.f32 %v493, %v608
        %610 = vmatmul.f32.gmra.mxu0 %v511
        %v611 = vpop.f32.mrf.mxu0
        %v612 = vadd.f32 %v493, %v611
        %613 = vmatmul.f32.gmra.mxu0 %v514
        %v614 = vpop.f32.mrf.mxu0
        %v615 = vadd.f32 %v493, %v614
        %616 = vmatmul.f32.gmra.mxu0 %v517
        %v617 = vpop.f32.mrf.mxu0
        %v618 = vadd.f32 %v493, %v617
        %619 = vmatmul.f32.gmra.mxu0 %v520
        %v620 = vpop.f32.mrf.mxu0
        %v621 = vadd.f32 %v493, %v620
        %622 = vmatmul.f32.gmra.mxu0 %v523
        %v623 = vpop.f32.mrf.mxu0
        %v624 = vadd.f32 %v493, %v623
        %625 = vmatmul.f32.gmra.mxu0 %v526
        %v626 = vpop.f32.mrf.mxu0
        %v627 = vadd.f32 %v493, %v626
        %628 = vmatmul.f32.gmra.mxu0 %v529
        %v629 = vpop.f32.mrf.mxu0
        %v630 = vadd.f32 %v493, %v629
        %631 = vmatmul.f32.gmra.mxu0 %v532
        %v632 = vpop.f32.mrf.mxu0
        %v633 = vadd.f32 %v493, %v632
        %634 = vmatmul.f32.gmra.mxu0 %v535
        %v635 = vpop.f32.mrf.mxu0
        %v636 = vadd.f32 %v493, %v635
        %637 = vmatmul.f32.gmra.mxu0 %v538
        %v638 = vpop.f32.mrf.mxu0
        %v639 = vadd.f32 %v493, %v638
        %640 = vmatmul.f32.gmra.mxu0 %v541
        %v641 = vpop.f32.mrf.mxu0
        %v642 = vadd.f32 %v493, %v641
        %643 = vmatmul.f32.gmra.mxu0 %v544
        %v644 = vpop.f32.mrf.mxu0
        %v645 = vadd.f32 %v493, %v644
        %646 = vmatmul.f32.gmra.mxu0 %v547
        %v647 = vpop.f32.mrf.mxu0
        %v648 = vadd.f32 %v493, %v647
        %649 = vmatmul.f32.gmra.mxu0 %v550
        %v650 = vpop.f32.mrf.mxu0
        %v651 = vadd.f32 %v493, %v650
        %652 = vmatmul.f32.gmra.mxu0 %v553
        %v653 = vpop.f32.mrf.mxu0
        %v654 = vadd.f32 %v493, %v653
        %655 = vmatmul.f32.gmra.mxu0 %v556
        %v656 = vpop.f32.mrf.mxu0
        %v657 = vadd.f32 %v493, %v656
        %658 = vmatmul.f32.gmra.mxu0 %v559
        %v659 = vpop.f32.mrf.mxu0
        %v660 = vadd.f32 %v493, %v659
        %661 = vmatmul.f32.gmra.mxu0 %v562
        %v662 = vpop.f32.mrf.mxu0
        %v663 = vadd.f32 %v493, %v662
        %664 = vmatmul.f32.gmra.mxu0 %v565
        %v665 = vpop.f32.mrf.mxu0
        %v666 = vadd.f32 %v493, %v665
        %667 = vmatmul.f32.gmra.mxu0 %v568
        %v668 = vpop.f32.mrf.mxu0
        %v669 = vadd.f32 %v493, %v668
        %670 = vmatmul.f32.gmra.mxu0 %v571
        %v671 = vpop.f32.mrf.mxu0
        %v672 = vadd.f32 %v493, %v671
        %673 = vmatmul.f32.gmra.mxu0 %v574
        %v674 = vpop.f32.mrf.mxu0
        %v675 = vadd.f32 %v493, %v674
        %676 = vmatmul.f32.gmra.mxu0 %v577
        %v677 = vpop.f32.mrf.mxu0
        %v678 = vadd.f32 %v493, %v677
        %679 = vdwg.mxu0
        %v680 = vadd.f32 %v609, %v621
        %v681 = vadd.f32 %v612, %v624
        %v682 = vadd.f32 %v615, %v627
        %v683 = vadd.f32 %v618, %v630
        %v684 = vadd.f32 %v680, %v633
        %v685 = vadd.f32 %v681, %v636
        %v686 = vadd.f32 %v682, %v639
        %v687 = vadd.f32 %v683, %v642
        %v688 = vadd.f32 %v684, %v645
        %v689 = vadd.f32 %v685, %v648
        %v690 = vadd.f32 %v686, %v651
        %v691 = vadd.f32 %v687, %v654
        %v692 = vadd.f32 %v688, %v657
        %v693 = vadd.f32 %v689, %v660
        %v694 = vadd.f32 %v690, %v663
        %v695 = vadd.f32 %v691, %v666
        %v696 = vadd.f32 %v692, %v669
        %v697 = vadd.f32 %v693, %v672
        %v698 = vadd.f32 %v694, %v675
        %v699 = vadd.f32 %v695, %v678
        %v700 = vmul.f32 %v696, 0.16666667
        %v701 = vmul.f32 %v697, 0.16666667
        %v702 = vmul.f32 %v698, 0.16666667
        %v703 = vmul.f32 %v699, 0.16666667
        %709 = vrot.lane.b32.xlu0 0.0, 32
        %v710 = vpop.permute.xlu0 %709
        %711 = vrot.lane.b32.xlu0 %v597, 32
        %v712 = vpop.permute.xlu0 %711
        %713 = vrot.lane.b32.xlu0 %v600, 32
        %v714 = vpop.permute.xlu0 %713
        %715 = vrot.lane.b32.xlu0 %v603, 32
        %v716 = vpop.permute.xlu0 %715
        %717 = vrot.lane.b32.xlu0 %v606, 32
        %v718 = vpop.permute.xlu0 %717
        %728 = vrot.lane.b32.xlu0 %v700, 64
        %v729 = vpop.permute.xlu0 %728
        %730 = vrot.lane.b32.xlu0 %v701, 64
        %v731 = vpop.permute.xlu0 %730
        %732 = vrot.lane.b32.xlu0 %v702, 64
        %v733 = vpop.permute.xlu0 %732
        %734 = vrot.lane.b32.xlu0 %v703, 64
        %v735 = vpop.permute.xlu0 %734
        %736 = vrot.lane.b32.xlu0 0.0, 64
        %v737 = vpop.permute.xlu0 %736
        %v743 = vsel %vm494, %v597, %v710
        %v744 = vsel %vm494, %v600, %v710
        %v745 = vsel %vm494, %v603, %v710
        %v746 = vsel %vm494, %v606, %v710
        %v747 = vsel %vm494, %v609, %v712
        %v748 = vsel %vm494, %v612, %v714
        %v749 = vsel %vm494, %v615, %v716
        %v750 = vsel %vm494, %v618, %v718
        %v751 = vsel %vm494, %v621, %v712
        %v752 = vsel %vm494, %v624, %v714
        %v753 = vsel %vm494, %v627, %v716
        %v754 = vsel %vm494, %v630, %v718
        %v755 = vsel %vm494, %v633, %v712
        %v756 = vsel %vm494, %v636, %v714
        %v757 = vsel %vm494, %v639, %v716
        %v758 = vsel %vm494, %v642, %v718
        %v759 = vsel %vm494, %v645, %v712
        %v760 = vsel %vm494, %v648, %v714
        %v761 = vsel %vm494, %v651, %v716
        %v762 = vsel %vm494, %v654, %v718
        %v763 = vsel %vm494, %v657, %v712
        %v764 = vsel %vm494, %v660, %v714
        %v765 = vsel %vm494, %v663, %v716
        %v766 = vsel %vm494, %v666, %v718
        %v767 = vsel %vm494, %v669, %v712
        %v768 = vsel %vm494, %v672, %v714
        %v769 = vsel %vm494, %v675, %v716
        %v770 = vsel %vm494, %v678, %v718
        %vm771 = vcmask 523264
        %v772 = vsel %vm771, %v743, %v729
        %v773 = vsel %vm771, %v744, %v731
        %v774 = vsel %vm771, %v745, %v733
        %v775 = vsel %vm771, %v746, %v735
        %v776 = vsel %vm771, %v747, %v737
        %v777 = vsel %vm771, %v748, %v737
        %v778 = vsel %vm771, %v749, %v737
        %v779 = vsel %vm771, %v750, %v737
        %v780 = vsel %vm771, %v751, %v737
        %v781 = vsel %vm771, %v752, %v737
        %v782 = vsel %vm771, %v753, %v737
        %v783 = vsel %vm771, %v754, %v737
        %v784 = vsel %vm771, %v755, %v737
        %v785 = vsel %vm771, %v756, %v737
        %v786 = vsel %vm771, %v757, %v737
        %v787 = vsel %vm771, %v758, %v737
        %v788 = vsel %vm771, %v759, %v737
        %v789 = vsel %vm771, %v760, %v737
        %v790 = vsel %vm771, %v761, %v737
        %v791 = vsel %vm771, %v762, %v737
        %v792 = vsel %vm771, %v763, %v737
        %v793 = vsel %vm771, %v764, %v737
        %v794 = vsel %vm771, %v765, %v737
        %v795 = vsel %vm771, %v766, %v737
        %v796 = vsel %vm771, %v767, %v737
        %v797 = vsel %vm771, %v768, %v737
        %v798 = vsel %vm771, %v769, %v737
        %v799 = vsel %vm771, %v770, %v737
        %v800 = vperm.slane %v249, 2
        %vm801 = vcmask 785408
        %v803 = vsel %vm801, %v772, 0
        %v806 = vsel %vm801, %v773, 0
        %v809 = vsel %vm801, %v774, 0
        %v812 = vsel %vm801, %v775, 0
        %v815 = vsel %vm801, %v776, 0
        %v818 = vsel %vm801, %v777, 0
        %v821 = vsel %vm801, %v778, 0
        %v824 = vsel %vm801, %v779, 0
        %v827 = vsel %vm801, %v780, 0
        %v830 = vsel %vm801, %v781, 0
        %v833 = vsel %vm801, %v782, 0
        %v836 = vsel %vm801, %v783, 0
        %v839 = vsel %vm801, %v784, 0
        %v842 = vsel %vm801, %v785, 0
        %v845 = vsel %vm801, %v786, 0
        %v848 = vsel %vm801, %v787, 0
        %v851 = vsel %vm801, %v788, 0
        %v854 = vsel %vm801, %v789, 0
        %v857 = vsel %vm801, %v790, 0
        %v860 = vsel %vm801, %v791, 0
        %v863 = vsel %vm801, %v792, 0
        %v866 = vsel %vm801, %v793, 0
        %v869 = vsel %vm801, %v794, 0
        %v872 = vsel %vm801, %v795, 0
        %v875 = vsel %vm801, %v796, 0
        %v878 = vsel %vm801, %v797, 0
        %v881 = vsel %vm801, %v798, 0
        %v884 = vsel %vm801, %v799, 0
        %886 = vmatpush.msra.mxu0 0.0
        %887 = vmatpush.msra.mxu0 0.0
        %888 = vmatpush.msra.mxu0 0.0
        %889 = vmatpush.msra.mxu0 0.0
        %890 = vmatpush.msra.mxu0 %v236
        %891 = vmatpush.msra.mxu0 %v235
        %892 = vmatpush.msra.mxu0 %v234
        %893 = vmatpush.msra.mxu0 %v233
        %894 = vmatpush.msra.mxu0 %v232
        %895 = vmatpush.msra.mxu0 %v231
        %896 = vmatpush.msra.mxu0 %v230
        %897 = vmatpush.msra.mxu0 %v229
        %898 = vmatpush.msra.mxu0 %v228
        %899 = vmatpush.msra.mxu0 %v227
        %900 = vmatpush.msra.mxu0 %v226
        %901 = vmatpush.msra.mxu0 %v225
        %902 = vmatmul.f32.gmra.mxu0 %v803
        %v903 = vpop.f32.mrf.mxu0
        %v904 = vadd.f32 %v800, %v903
        %905 = vmatmul.f32.gmra.mxu0 %v806
        %v906 = vpop.f32.mrf.mxu0
        %v907 = vadd.f32 %v800, %v906
        %908 = vmatmul.f32.gmra.mxu0 %v809
        %v909 = vpop.f32.mrf.mxu0
        %v910 = vadd.f32 %v800, %v909
        %911 = vmatmul.f32.gmra.mxu0 %v812
        %v912 = vpop.f32.mrf.mxu0
        %v913 = vadd.f32 %v800, %v912
        %914 = vmatmul.f32.gmra.mxu0 %v815
        %v915 = vpop.f32.mrf.mxu0
        %v916 = vadd.f32 %v800, %v915
        %917 = vmatmul.f32.gmra.mxu0 %v818
        %v918 = vpop.f32.mrf.mxu0
        %v919 = vadd.f32 %v800, %v918
        %920 = vmatmul.f32.gmra.mxu0 %v821
        %v921 = vpop.f32.mrf.mxu0
        %v922 = vadd.f32 %v800, %v921
        %923 = vmatmul.f32.gmra.mxu0 %v824
        %v924 = vpop.f32.mrf.mxu0
        %v925 = vadd.f32 %v800, %v924
        %926 = vmatmul.f32.gmra.mxu0 %v827
        %v927 = vpop.f32.mrf.mxu0
        %v928 = vadd.f32 %v800, %v927
        %929 = vmatmul.f32.gmra.mxu0 %v830
        %v930 = vpop.f32.mrf.mxu0
        %v931 = vadd.f32 %v800, %v930
        %932 = vmatmul.f32.gmra.mxu0 %v833
        %v933 = vpop.f32.mrf.mxu0
        %v934 = vadd.f32 %v800, %v933
        %935 = vmatmul.f32.gmra.mxu0 %v836
        %v936 = vpop.f32.mrf.mxu0
        %v937 = vadd.f32 %v800, %v936
        %938 = vmatmul.f32.gmra.mxu0 %v839
        %v939 = vpop.f32.mrf.mxu0
        %v940 = vadd.f32 %v800, %v939
        %941 = vmatmul.f32.gmra.mxu0 %v842
        %v942 = vpop.f32.mrf.mxu0
        %v943 = vadd.f32 %v800, %v942
        %944 = vmatmul.f32.gmra.mxu0 %v845
        %v945 = vpop.f32.mrf.mxu0
        %v946 = vadd.f32 %v800, %v945
        %947 = vmatmul.f32.gmra.mxu0 %v848
        %v948 = vpop.f32.mrf.mxu0
        %v949 = vadd.f32 %v800, %v948
        %950 = vmatmul.f32.gmra.mxu0 %v851
        %v951 = vpop.f32.mrf.mxu0
        %v952 = vadd.f32 %v800, %v951
        %953 = vmatmul.f32.gmra.mxu0 %v854
        %v954 = vpop.f32.mrf.mxu0
        %v955 = vadd.f32 %v800, %v954
        %956 = vmatmul.f32.gmra.mxu0 %v857
        %v957 = vpop.f32.mrf.mxu0
        %v958 = vadd.f32 %v800, %v957
        %959 = vmatmul.f32.gmra.mxu0 %v860
        %v960 = vpop.f32.mrf.mxu0
        %v961 = vadd.f32 %v800, %v960
        %962 = vmatmul.f32.gmra.mxu0 %v863
        %v963 = vpop.f32.mrf.mxu0
        %v964 = vadd.f32 %v800, %v963
        %965 = vmatmul.f32.gmra.mxu0 %v866
        %v966 = vpop.f32.mrf.mxu0
        %v967 = vadd.f32 %v800, %v966
        %968 = vmatmul.f32.gmra.mxu0 %v869
        %v969 = vpop.f32.mrf.mxu0
        %v970 = vadd.f32 %v800, %v969
        %971 = vmatmul.f32.gmra.mxu0 %v872
        %v972 = vpop.f32.mrf.mxu0
        %v973 = vadd.f32 %v800, %v972
        %974 = vmatmul.f32.gmra.mxu0 %v875
        %v975 = vpop.f32.mrf.mxu0
        %v976 = vadd.f32 %v800, %v975
        %977 = vmatmul.f32.gmra.mxu0 %v878
        %v978 = vpop.f32.mrf.mxu0
        %v979 = vadd.f32 %v800, %v978
        %980 = vmatmul.f32.gmra.mxu0 %v881
        %v981 = vpop.f32.mrf.mxu0
        %v982 = vadd.f32 %v800, %v981
        %983 = vmatmul.f32.gmra.mxu0 %v884
        %v984 = vpop.f32.mrf.mxu0
        %v985 = vadd.f32 %v800, %v984
        %986 = vdwg.mxu0
        %v987 = vmax.f32 %v904, 0.0
        %v988 = vmax.f32 %v907, 0.0
        %v989 = vmax.f32 %v910, 0.0
        %v990 = vmax.f32 %v913, 0.0
        %v991 = vmax.f32 %v916, 0.0
        %v992 = vmax.f32 %v919, 0.0
        %v993 = vmax.f32 %v922, 0.0
        %v994 = vmax.f32 %v925, 0.0
        %v995 = vmax.f32 %v928, 0.0
        %v996 = vmax.f32 %v931, 0.0
        %v997 = vmax.f32 %v934, 0.0
        %v998 = vmax.f32 %v937, 0.0
        %v999 = vmax.f32 %v940, 0.0
        %v1000 = vmax.f32 %v943, 0.0
        %v1001 = vmax.f32 %v946, 0.0
        %v1002 = vmax.f32 %v949, 0.0
        %v1003 = vmax.f32 %v952, 0.0
        %v1004 = vmax.f32 %v955, 0.0
        %v1005 = vmax.f32 %v958, 0.0
        %v1006 = vmax.f32 %v961, 0.0
        %v1007 = vmax.f32 %v964, 0.0
        %v1008 = vmax.f32 %v967, 0.0
        %v1009 = vmax.f32 %v970, 0.0
        %v1010 = vmax.f32 %v973, 0.0
        %v1011 = vmax.f32 %v976, 0.0
        %v1012 = vmax.f32 %v979, 0.0
        %v1013 = vmax.f32 %v982, 0.0
        %v1014 = vmax.f32 %v985, 0.0
        %v1016 = vsel %vm494, %v987, 0
        %v1019 = vsel %vm494, %v988, 0
        %v1022 = vsel %vm494, %v989, 0
        %v1025 = vsel %vm494, %v990, 0
        %v1028 = vsel %vm494, %v991, 0
        %v1031 = vsel %vm494, %v992, 0
        %v1034 = vsel %vm494, %v993, 0
        %v1037 = vsel %vm494, %v994, 0
        %v1040 = vsel %vm494, %v995, 0
        %v1043 = vsel %vm494, %v996, 0
        %v1046 = vsel %vm494, %v997, 0
        %v1049 = vsel %vm494, %v998, 0
        %v1052 = vsel %vm494, %v999, 0
        %v1055 = vsel %vm494, %v1000, 0
        %v1058 = vsel %vm494, %v1001, 0
        %v1061 = vsel %vm494, %v1002, 0
        %v1064 = vsel %vm494, %v1003, 0
        %v1067 = vsel %vm494, %v1004, 0
        %v1070 = vsel %vm494, %v1005, 0
        %v1073 = vsel %vm494, %v1006, 0
        %v1076 = vsel %vm494, %v1007, 0
        %v1079 = vsel %vm494, %v1008, 0
        %v1082 = vsel %vm494, %v1009, 0
        %v1085 = vsel %vm494, %v1010, 0
        %v1088 = vsel %vm494, %v1011, 0
        %v1091 = vsel %vm494, %v1012, 0
        %v1094 = vsel %vm494, %v1013, 0
        %v1097 = vsel %vm494, %v1014, 0
        %1099 = vmatpush.msra.mxu0 0.0
        %1100 = vmatpush.msra.mxu0 0.0
        %1101 = vmatpush.msra.mxu0 0.0
        %1102 = vmatpush.msra.mxu0 0.0
        %1103 = vmatpush.msra.mxu0 0.0
        %1104 = vmatpush.msra.mxu0 0.0
        %1105 = vmatpush.msra.mxu0 0.0
        %1106 = vmatpush.msra.mxu0 0.0
        %1107 = vmatpush.msra.mxu0 0.0
        %1108 = vmatpush.msra.mxu0 0.0
        %1109 = vmatpush.msra.mxu0 0.0
        %1110 = vmatpush.msra.mxu0 0.0
        %1111 = vmatpush.msra.mxu0 %v240
        %1112 = vmatpush.msra.mxu0 %v239
        %1113 = vmatpush.msra.mxu0 %v238
        %1114 = vmatpush.msra.mxu0 %v237
        %1115 = vmatmul.f32.gmra.mxu0 %v1016
        %v1116 = vpop.f32.mrf.mxu0
        %v1117 = vadd.f32 0.0, %v1116
        %1118 = vmatmul.f32.gmra.mxu0 %v1019
        %v1119 = vpop.f32.mrf.mxu0
        %v1120 = vadd.f32 0.0, %v1119
        %1121 = vmatmul.f32.gmra.mxu0 %v1022
        %v1122 = vpop.f32.mrf.mxu0
        %v1123 = vadd.f32 0.0, %v1122
        %1124 = vmatmul.f32.gmra.mxu0 %v1025
        %v1125 = vpop.f32.mrf.mxu0
        %v1126 = vadd.f32 0.0, %v1125
        %1127 = vmatmul.f32.gmra.mxu0 %v1028
        %v1128 = vpop.f32.mrf.mxu0
        %v1129 = vadd.f32 0.0, %v1128
        %1130 = vmatmul.f32.gmra.mxu0 %v1031
        %v1131 = vpop.f32.mrf.mxu0
        %v1132 = vadd.f32 0.0, %v1131
        %1133 = vmatmul.f32.gmra.mxu0 %v1034
        %v1134 = vpop.f32.mrf.mxu0
        %v1135 = vadd.f32 0.0, %v1134
        %1136 = vmatmul.f32.gmra.mxu0 %v1037
        %v1137 = vpop.f32.mrf.mxu0
        %v1138 = vadd.f32 0.0, %v1137
        %1139 = vmatmul.f32.gmra.mxu0 %v1040
        %v1140 = vpop.f32.mrf.mxu0
        %v1141 = vadd.f32 0.0, %v1140
        %1142 = vmatmul.f32.gmra.mxu0 %v1043
        %v1143 = vpop.f32.mrf.mxu0
        %v1144 = vadd.f32 0.0, %v1143
        %1145 = vmatmul.f32.gmra.mxu0 %v1046
        %v1146 = vpop.f32.mrf.mxu0
        %v1147 = vadd.f32 0.0, %v1146
        %1148 = vmatmul.f32.gmra.mxu0 %v1049
        %v1149 = vpop.f32.mrf.mxu0
        %v1150 = vadd.f32 0.0, %v1149
        %1151 = vmatmul.f32.gmra.mxu0 %v1052
        %v1152 = vpop.f32.mrf.mxu0
        %v1153 = vadd.f32 0.0, %v1152
        %1154 = vmatmul.f32.gmra.mxu0 %v1055
        %v1155 = vpop.f32.mrf.mxu0
        %v1156 = vadd.f32 0.0, %v1155
        %1157 = vmatmul.f32.gmra.mxu0 %v1058
        %v1158 = vpop.f32.mrf.mxu0
        %v1159 = vadd.f32 0.0, %v1158
        %1160 = vmatmul.f32.gmra.mxu0 %v1061
        %v1161 = vpop.f32.mrf.mxu0
        %v1162 = vadd.f32 0.0, %v1161
        %1163 = vmatmul.f32.gmra.mxu0 %v1064
        %v1164 = vpop.f32.mrf.mxu0
        %v1165 = vadd.f32 0.0, %v1164
        %1166 = vmatmul.f32.gmra.mxu0 %v1067
        %v1167 = vpop.f32.mrf.mxu0
        %v1168 = vadd.f32 0.0, %v1167
        %1169 = vmatmul.f32.gmra.mxu0 %v1070
        %v1170 = vpop.f32.mrf.mxu0
        %v1171 = vadd.f32 0.0, %v1170
        %1172 = vmatmul.f32.gmra.mxu0 %v1073
        %v1173 = vpop.f32.mrf.mxu0
        %v1174 = vadd.f32 0.0, %v1173
        %1175 = vmatmul.f32.gmra.mxu0 %v1076
        %v1176 = vpop.f32.mrf.mxu0
        %v1177 = vadd.f32 0.0, %v1176
        %1178 = vmatmul.f32.gmra.mxu0 %v1079
        %v1179 = vpop.f32.mrf.mxu0
        %v1180 = vadd.f32 0.0, %v1179
        %1181 = vmatmul.f32.gmra.mxu0 %v1082
        %v1182 = vpop.f32.mrf.mxu0
        %v1183 = vadd.f32 0.0, %v1182
        %1184 = vmatmul.f32.gmra.mxu0 %v1085
        %v1185 = vpop.f32.mrf.mxu0
        %v1186 = vadd.f32 0.0, %v1185
        %1187 = vmatmul.f32.gmra.mxu0 %v1088
        %v1188 = vpop.f32.mrf.mxu0
        %v1189 = vadd.f32 0.0, %v1188
        %1190 = vmatmul.f32.gmra.mxu0 %v1091
        %v1191 = vpop.f32.mrf.mxu0
        %v1192 = vadd.f32 0.0, %v1191
        %1193 = vmatmul.f32.gmra.mxu0 %v1094
        %v1194 = vpop.f32.mrf.mxu0
        %v1195 = vadd.f32 0.0, %v1194
        %1196 = vmatmul.f32.gmra.mxu0 %v1097
        %v1197 = vpop.f32.mrf.mxu0
        %v1198 = vadd.f32 0.0, %v1197
        %1199 = vdwg.mxu0
        %v1200 = vadd.f32 %v597, %v1117
        %v1201 = vadd.f32 %v600, %v1120
        %v1202 = vadd.f32 %v603, %v1123
        %v1203 = vadd.f32 %v606, %v1126
        %v1204 = vadd.f32 %v609, %v1129
        %v1205 = vadd.f32 %v612, %v1132
        %v1206 = vadd.f32 %v615, %v1135
        %v1207 = vadd.f32 %v618, %v1138
        %v1208 = vadd.f32 %v621, %v1141
        %v1209 = vadd.f32 %v624, %v1144
        %v1210 = vadd.f32 %v627, %v1147
        %v1211 = vadd.f32 %v630, %v1150
        %v1212 = vadd.f32 %v633, %v1153
        %v1213 = vadd.f32 %v636, %v1156
        %v1214 = vadd.f32 %v639, %v1159
        %v1215 = vadd.f32 %v642, %v1162
        %v1216 = vadd.f32 %v645, %v1165
        %v1217 = vadd.f32 %v648, %v1168
        %v1218 = vadd.f32 %v651, %v1171
        %v1219 = vadd.f32 %v654, %v1174
        %v1220 = vadd.f32 %v657, %v1177
        %v1221 = vadd.f32 %v660, %v1180
        %v1222 = vadd.f32 %v663, %v1183
        %v1223 = vadd.f32 %v666, %v1186
        %v1224 = vadd.f32 %v669, %v1189
        %v1225 = vadd.f32 %v672, %v1192
        %v1226 = vadd.f32 %v675, %v1195
        %v1227 = vadd.f32 %v678, %v1198
        %v1228 = vperm.slane %v249, 3
        %v1229 = vadd.f32 %v1200, %v1228
        %v1230 = vadd.f32 %v1201, %v1228
        %v1231 = vadd.f32 %v1202, %v1228
        %v1232 = vadd.f32 %v1203, %v1228
        %v1233 = vadd.f32 %v1204, %v1228
        %v1234 = vadd.f32 %v1205, %v1228
        %v1235 = vadd.f32 %v1206, %v1228
        %v1236 = vadd.f32 %v1207, %v1228
        %v1237 = vadd.f32 %v1208, %v1228
        %v1238 = vadd.f32 %v1209, %v1228
        %v1239 = vadd.f32 %v1210, %v1228
        %v1240 = vadd.f32 %v1211, %v1228
        %v1241 = vadd.f32 %v1212, %v1228
        %v1242 = vadd.f32 %v1213, %v1228
        %v1243 = vadd.f32 %v1214, %v1228
        %v1244 = vadd.f32 %v1215, %v1228
        %v1245 = vadd.f32 %v1216, %v1228
        %v1246 = vadd.f32 %v1217, %v1228
        %v1247 = vadd.f32 %v1218, %v1228
        %v1248 = vadd.f32 %v1219, %v1228
        %v1249 = vadd.f32 %v1220, %v1228
        %v1250 = vadd.f32 %v1221, %v1228
        %v1251 = vadd.f32 %v1222, %v1228
        %v1252 = vadd.f32 %v1223, %v1228
        %v1253 = vadd.f32 %v1224, %v1228
        %v1254 = vadd.f32 %v1225, %v1228
        %v1255 = vadd.f32 %v1226, %v1228
        %v1256 = vadd.f32 %v1227, %v1228
        %v1257 = vadd.f32 %v1233, %v1237
        %v1258 = vadd.f32 %v1234, %v1238
        %v1259 = vadd.f32 %v1235, %v1239
        %v1260 = vadd.f32 %v1236, %v1240
        %v1261 = vadd.f32 %v1257, %v1241
        %v1262 = vadd.f32 %v1258, %v1242
        %v1263 = vadd.f32 %v1259, %v1243
        %v1264 = vadd.f32 %v1260, %v1244
        %v1265 = vadd.f32 %v1261, %v1245
        %v1266 = vadd.f32 %v1262, %v1246
        %v1267 = vadd.f32 %v1263, %v1247
        %v1268 = vadd.f32 %v1264, %v1248
        %v1269 = vadd.f32 %v1265, %v1249
        %v1270 = vadd.f32 %v1266, %v1250
        %v1271 = vadd.f32 %v1267, %v1251
        %v1272 = vadd.f32 %v1268, %v1252
        %v1273 = vadd.f32 %v1269, %v1253
        %v1274 = vadd.f32 %v1270, %v1254
        %v1275 = vadd.f32 %v1271, %v1255
        %v1276 = vadd.f32 %v1272, %v1256
        %v1277 = vmul.f32 %v1273, 0.16666667
        %v1278 = vmul.f32 %v1274, 0.16666667
        %v1279 = vmul.f32 %v1275, 0.16666667
        %v1280 = vmul.f32 %v1276, 0.16666667
        %1285 = vrot.lane.b32.xlu0 %v1229, 32
        %v1286 = vpop.permute.xlu0 %1285
        %1287 = vrot.lane.b32.xlu0 %v1230, 32
        %v1288 = vpop.permute.xlu0 %1287
        %1289 = vrot.lane.b32.xlu0 %v1231, 32
        %v1290 = vpop.permute.xlu0 %1289
        %1291 = vrot.lane.b32.xlu0 %v1232, 32
        %v1292 = vpop.permute.xlu0 %1291
        %1301 = vrot.lane.b32.xlu0 %v1277, 64
        %v1302 = vpop.permute.xlu0 %1301
        %1303 = vrot.lane.b32.xlu0 %v1278, 64
        %v1304 = vpop.permute.xlu0 %1303
        %1305 = vrot.lane.b32.xlu0 %v1279, 64
        %v1306 = vpop.permute.xlu0 %1305
        %1307 = vrot.lane.b32.xlu0 %v1280, 64
        %v1308 = vpop.permute.xlu0 %1307
        %v1313 = vsel %vm494, %v1229, %v710
        %v1314 = vsel %vm494, %v1230, %v710
        %v1315 = vsel %vm494, %v1231, %v710
        %v1316 = vsel %vm494, %v1232, %v710
        %v1317 = vsel %vm494, %v1233, %v1286
        %v1318 = vsel %vm494, %v1234, %v1288
        %v1319 = vsel %vm494, %v1235, %v1290
        %v1320 = vsel %vm494, %v1236, %v1292
        %v1321 = vsel %vm494, %v1237, %v1286
        %v1322 = vsel %vm494, %v1238, %v1288
        %v1323 = vsel %vm494, %v1239, %v1290
        %v1324 = vsel %vm494, %v1240, %v1292
        %v1325 = vsel %vm494, %v1241, %v1286
        %v1326 = vsel %vm494, %v1242, %v1288
        %v1327 = vsel %vm494, %v1243, %v1290
        %v1328 = vsel %vm494, %v1244, %v1292
        %v1329 = vsel %vm494, %v1245, %v1286
        %v1330 = vsel %vm494, %v1246, %v1288
        %v1331 = vsel %vm494, %v1247, %v1290
        %v1332 = vsel %vm494, %v1248, %v1292
        %v1333 = vsel %vm494, %v1249, %v1286
        %v1334 = vsel %vm494, %v1250, %v1288
        %v1335 = vsel %vm494, %v1251, %v1290
        %v1336 = vsel %vm494, %v1252, %v1292
        %v1337 = vsel %vm494, %v1253, %v1286
        %v1338 = vsel %vm494, %v1254, %v1288
        %v1339 = vsel %vm494, %v1255, %v1290
        %v1340 = vsel %vm494, %v1256, %v1292
        %v1341 = vsel %vm771, %v1313, %v1302
        %v1342 = vsel %vm771, %v1314, %v1304
        %v1343 = vsel %vm771, %v1315, %v1306
        %v1344 = vsel %vm771, %v1316, %v1308
        %v1345 = vsel %vm771, %v1317, %v737
        %v1346 = vsel %vm771, %v1318, %v737
        %v1347 = vsel %vm771, %v1319, %v737
        %v1348 = vsel %vm771, %v1320, %v737
        %v1349 = vsel %vm771, %v1321, %v737
        %v1350 = vsel %vm771, %v1322, %v737
        %v1351 = vsel %vm771, %v1323, %v737
        %v1352 = vsel %vm771, %v1324, %v737
        %v1353 = vsel %vm771, %v1325, %v737
        %v1354 = vsel %vm771, %v1326, %v737
        %v1355 = vsel %vm771, %v1327, %v737
        %v1356 = vsel %vm771, %v1328, %v737
        %v1357 = vsel %vm771, %v1329, %v737
        %v1358 = vsel %vm771, %v1330, %v737
        %v1359 = vsel %vm771, %v1331, %v737
        %v1360 = vsel %vm771, %v1332, %v737
        %v1361 = vsel %vm771, %v1333, %v737
        %v1362 = vsel %vm771, %v1334, %v737
        %v1363 = vsel %vm771, %v1335, %v737
        %v1364 = vsel %vm771, %v1336, %v737
        %v1365 = vsel %vm771, %v1337, %v737
        %v1366 = vsel %vm771, %v1338, %v737
        %v1367 = vsel %vm771, %v1339, %v737
        %v1368 = vsel %vm771, %v1340, %v737
        %v1370 = vsel %vm801, %v1341, 0
        %v1373 = vsel %vm801, %v1342, 0
        %v1376 = vsel %vm801, %v1343, 0
        %v1379 = vsel %vm801, %v1344, 0
        %v1382 = vsel %vm801, %v1345, 0
        %v1385 = vsel %vm801, %v1346, 0
        %v1388 = vsel %vm801, %v1347, 0
        %v1391 = vsel %vm801, %v1348, 0
        %v1394 = vsel %vm801, %v1349, 0
        %v1397 = vsel %vm801, %v1350, 0
        %v1400 = vsel %vm801, %v1351, 0
        %v1403 = vsel %vm801, %v1352, 0
        %v1406 = vsel %vm801, %v1353, 0
        %v1409 = vsel %vm801, %v1354, 0
        %v1412 = vsel %vm801, %v1355, 0
        %v1415 = vsel %vm801, %v1356, 0
        %v1418 = vsel %vm801, %v1357, 0
        %v1421 = vsel %vm801, %v1358, 0
        %v1424 = vsel %vm801, %v1359, 0
        %v1427 = vsel %vm801, %v1360, 0
        %v1430 = vsel %vm801, %v1361, 0
        %v1433 = vsel %vm801, %v1362, 0
        %v1436 = vsel %vm801, %v1363, 0
        %v1439 = vsel %vm801, %v1364, 0
        %v1442 = vsel %vm801, %v1365, 0
        %v1445 = vsel %vm801, %v1366, 0
        %v1448 = vsel %vm801, %v1367, 0
        %v1451 = vsel %vm801, %v1368, 0
        %1453 = vmatpush.msra.mxu0 0.0
        %1454 = vmatpush.msra.mxu0 0.0
        %1455 = vmatpush.msra.mxu0 0.0
        %1456 = vmatpush.msra.mxu0 0.0
        %1457 = vmatpush.msra.mxu0 %v236
        %1458 = vmatpush.msra.mxu0 %v235
        %1459 = vmatpush.msra.mxu0 %v234
        %1460 = vmatpush.msra.mxu0 %v233
        %1461 = vmatpush.msra.mxu0 %v232
        %1462 = vmatpush.msra.mxu0 %v231
        %1463 = vmatpush.msra.mxu0 %v230
        %1464 = vmatpush.msra.mxu0 %v229
        %1465 = vmatpush.msra.mxu0 %v228
        %1466 = vmatpush.msra.mxu0 %v227
        %1467 = vmatpush.msra.mxu0 %v226
        %1468 = vmatpush.msra.mxu0 %v225
        %1469 = vmatmul.f32.gmra.mxu0 %v1370
        %v1470 = vpop.f32.mrf.mxu0
        %v1471 = vadd.f32 %v800, %v1470
        %1472 = vmatmul.f32.gmra.mxu0 %v1373
        %v1473 = vpop.f32.mrf.mxu0
        %v1474 = vadd.f32 %v800, %v1473
        %1475 = vmatmul.f32.gmra.mxu0 %v1376
        %v1476 = vpop.f32.mrf.mxu0
        %v1477 = vadd.f32 %v800, %v1476
        %1478 = vmatmul.f32.gmra.mxu0 %v1379
        %v1479 = vpop.f32.mrf.mxu0
        %v1480 = vadd.f32 %v800, %v1479
        %1481 = vmatmul.f32.gmra.mxu0 %v1382
        %v1482 = vpop.f32.mrf.mxu0
        %v1483 = vadd.f32 %v800, %v1482
        %1484 = vmatmul.f32.gmra.mxu0 %v1385
        %v1485 = vpop.f32.mrf.mxu0
        %v1486 = vadd.f32 %v800, %v1485
        %1487 = vmatmul.f32.gmra.mxu0 %v1388
        %v1488 = vpop.f32.mrf.mxu0
        %v1489 = vadd.f32 %v800, %v1488
        %1490 = vmatmul.f32.gmra.mxu0 %v1391
        %v1491 = vpop.f32.mrf.mxu0
        %v1492 = vadd.f32 %v800, %v1491
        %1493 = vmatmul.f32.gmra.mxu0 %v1394
        %v1494 = vpop.f32.mrf.mxu0
        %v1495 = vadd.f32 %v800, %v1494
        %1496 = vmatmul.f32.gmra.mxu0 %v1397
        %v1497 = vpop.f32.mrf.mxu0
        %v1498 = vadd.f32 %v800, %v1497
        %1499 = vmatmul.f32.gmra.mxu0 %v1400
        %v1500 = vpop.f32.mrf.mxu0
        %v1501 = vadd.f32 %v800, %v1500
        %1502 = vmatmul.f32.gmra.mxu0 %v1403
        %v1503 = vpop.f32.mrf.mxu0
        %v1504 = vadd.f32 %v800, %v1503
        %1505 = vmatmul.f32.gmra.mxu0 %v1406
        %v1506 = vpop.f32.mrf.mxu0
        %v1507 = vadd.f32 %v800, %v1506
        %1508 = vmatmul.f32.gmra.mxu0 %v1409
        %v1509 = vpop.f32.mrf.mxu0
        %v1510 = vadd.f32 %v800, %v1509
        %1511 = vmatmul.f32.gmra.mxu0 %v1412
        %v1512 = vpop.f32.mrf.mxu0
        %v1513 = vadd.f32 %v800, %v1512
        %1514 = vmatmul.f32.gmra.mxu0 %v1415
        %v1515 = vpop.f32.mrf.mxu0
        %v1516 = vadd.f32 %v800, %v1515
        %1517 = vmatmul.f32.gmra.mxu0 %v1418
        %v1518 = vpop.f32.mrf.mxu0
        %v1519 = vadd.f32 %v800, %v1518
        %1520 = vmatmul.f32.gmra.mxu0 %v1421
        %v1521 = vpop.f32.mrf.mxu0
        %v1522 = vadd.f32 %v800, %v1521
        %1523 = vmatmul.f32.gmra.mxu0 %v1424
        %v1524 = vpop.f32.mrf.mxu0
        %v1525 = vadd.f32 %v800, %v1524
        %1526 = vmatmul.f32.gmra.mxu0 %v1427
        %v1527 = vpop.f32.mrf.mxu0
        %v1528 = vadd.f32 %v800, %v1527
        %1529 = vmatmul.f32.gmra.mxu0 %v1430
        %v1530 = vpop.f32.mrf.mxu0
        %v1531 = vadd.f32 %v800, %v1530
        %1532 = vmatmul.f32.gmra.mxu0 %v1433
        %v1533 = vpop.f32.mrf.mxu0
        %v1534 = vadd.f32 %v800, %v1533
        %1535 = vmatmul.f32.gmra.mxu0 %v1436
        %v1536 = vpop.f32.mrf.mxu0
        %v1537 = vadd.f32 %v800, %v1536
        %1538 = vmatmul.f32.gmra.mxu0 %v1439
        %v1539 = vpop.f32.mrf.mxu0
        %v1540 = vadd.f32 %v800, %v1539
        %1541 = vmatmul.f32.gmra.mxu0 %v1442
        %v1542 = vpop.f32.mrf.mxu0
        %v1543 = vadd.f32 %v800, %v1542
        %1544 = vmatmul.f32.gmra.mxu0 %v1445
        %v1545 = vpop.f32.mrf.mxu0
        %v1546 = vadd.f32 %v800, %v1545
        %1547 = vmatmul.f32.gmra.mxu0 %v1448
        %v1548 = vpop.f32.mrf.mxu0
        %v1549 = vadd.f32 %v800, %v1548
        %1550 = vmatmul.f32.gmra.mxu0 %v1451
        %v1551 = vpop.f32.mrf.mxu0
        %v1552 = vadd.f32 %v800, %v1551
        %1553 = vdwg.mxu0
        %v1554 = vmax.f32 %v1471, 0.0
        %v1555 = vmax.f32 %v1474, 0.0
        %v1556 = vmax.f32 %v1477, 0.0
        %v1557 = vmax.f32 %v1480, 0.0
        %v1558 = vmax.f32 %v1483, 0.0
        %v1559 = vmax.f32 %v1486, 0.0
        %v1560 = vmax.f32 %v1489, 0.0
        %v1561 = vmax.f32 %v1492, 0.0
        %v1562 = vmax.f32 %v1495, 0.0
        %v1563 = vmax.f32 %v1498, 0.0
        %v1564 = vmax.f32 %v1501, 0.0
        %v1565 = vmax.f32 %v1504, 0.0
        %v1566 = vmax.f32 %v1507, 0.0
        %v1567 = vmax.f32 %v1510, 0.0
        %v1568 = vmax.f32 %v1513, 0.0
        %v1569 = vmax.f32 %v1516, 0.0
        %v1570 = vmax.f32 %v1519, 0.0
        %v1571 = vmax.f32 %v1522, 0.0
        %v1572 = vmax.f32 %v1525, 0.0
        %v1573 = vmax.f32 %v1528, 0.0
        %v1574 = vmax.f32 %v1531, 0.0
        %v1575 = vmax.f32 %v1534, 0.0
        %v1576 = vmax.f32 %v1537, 0.0
        %v1577 = vmax.f32 %v1540, 0.0
        %v1578 = vmax.f32 %v1543, 0.0
        %v1579 = vmax.f32 %v1546, 0.0
        %v1580 = vmax.f32 %v1549, 0.0
        %v1581 = vmax.f32 %v1552, 0.0
        %v1583 = vsel %vm494, %v1554, 0
        %v1586 = vsel %vm494, %v1555, 0
        %v1589 = vsel %vm494, %v1556, 0
        %v1592 = vsel %vm494, %v1557, 0
        %v1595 = vsel %vm494, %v1558, 0
        %v1598 = vsel %vm494, %v1559, 0
        %v1601 = vsel %vm494, %v1560, 0
        %v1604 = vsel %vm494, %v1561, 0
        %v1607 = vsel %vm494, %v1562, 0
        %v1610 = vsel %vm494, %v1563, 0
        %v1613 = vsel %vm494, %v1564, 0
        %v1616 = vsel %vm494, %v1565, 0
        %v1619 = vsel %vm494, %v1566, 0
        %v1622 = vsel %vm494, %v1567, 0
        %v1625 = vsel %vm494, %v1568, 0
        %v1628 = vsel %vm494, %v1569, 0
        %v1631 = vsel %vm494, %v1570, 0
        %v1634 = vsel %vm494, %v1571, 0
        %v1637 = vsel %vm494, %v1572, 0
        %v1640 = vsel %vm494, %v1573, 0
        %v1643 = vsel %vm494, %v1574, 0
        %v1646 = vsel %vm494, %v1575, 0
        %v1649 = vsel %vm494, %v1576, 0
        %v1652 = vsel %vm494, %v1577, 0
        %v1655 = vsel %vm494, %v1578, 0
        %v1658 = vsel %vm494, %v1579, 0
        %v1661 = vsel %vm494, %v1580, 0
        %v1664 = vsel %vm494, %v1581, 0
        %1666 = vmatpush.msra.mxu0 0.0
        %1667 = vmatpush.msra.mxu0 0.0
        %1668 = vmatpush.msra.mxu0 0.0
        %1669 = vmatpush.msra.mxu0 0.0
        %1670 = vmatpush.msra.mxu0 0.0
        %1671 = vmatpush.msra.mxu0 0.0
        %1672 = vmatpush.msra.mxu0 0.0
        %1673 = vmatpush.msra.mxu0 0.0
        %1674 = vmatpush.msra.mxu0 0.0
        %1675 = vmatpush.msra.mxu0 0.0
        %1676 = vmatpush.msra.mxu0 0.0
        %1677 = vmatpush.msra.mxu0 0.0
        %1678 = vmatpush.msra.mxu0 %v240
        %1679 = vmatpush.msra.mxu0 %v239
        %1680 = vmatpush.msra.mxu0 %v238
        %1681 = vmatpush.msra.mxu0 %v237
        %1682 = vmatmul.f32.gmra.mxu0 %v1583
        %v1683 = vpop.f32.mrf.mxu0
        %v1684 = vadd.f32 0.0, %v1683
        %1685 = vmatmul.f32.gmra.mxu0 %v1586
        %v1686 = vpop.f32.mrf.mxu0
        %v1687 = vadd.f32 0.0, %v1686
        %1688 = vmatmul.f32.gmra.mxu0 %v1589
        %v1689 = vpop.f32.mrf.mxu0
        %v1690 = vadd.f32 0.0, %v1689
        %1691 = vmatmul.f32.gmra.mxu0 %v1592
        %v1692 = vpop.f32.mrf.mxu0
        %v1693 = vadd.f32 0.0, %v1692
        %1694 = vmatmul.f32.gmra.mxu0 %v1595
        %v1695 = vpop.f32.mrf.mxu0
        %v1696 = vadd.f32 0.0, %v1695
        %1697 = vmatmul.f32.gmra.mxu0 %v1598
        %v1698 = vpop.f32.mrf.mxu0
        %v1699 = vadd.f32 0.0, %v1698
        %1700 = vmatmul.f32.gmra.mxu0 %v1601
        %v1701 = vpop.f32.mrf.mxu0
        %v1702 = vadd.f32 0.0, %v1701
        %1703 = vmatmul.f32.gmra.mxu0 %v1604
        %v1704 = vpop.f32.mrf.mxu0
        %v1705 = vadd.f32 0.0, %v1704
        %1706 = vmatmul.f32.gmra.mxu0 %v1607
        %v1707 = vpop.f32.mrf.mxu0
        %v1708 = vadd.f32 0.0, %v1707
        %1709 = vmatmul.f32.gmra.mxu0 %v1610
        %v1710 = vpop.f32.mrf.mxu0
        %v1711 = vadd.f32 0.0, %v1710
        %1712 = vmatmul.f32.gmra.mxu0 %v1613
        %v1713 = vpop.f32.mrf.mxu0
        %v1714 = vadd.f32 0.0, %v1713
        %1715 = vmatmul.f32.gmra.mxu0 %v1616
        %v1716 = vpop.f32.mrf.mxu0
        %v1717 = vadd.f32 0.0, %v1716
        %1718 = vmatmul.f32.gmra.mxu0 %v1619
        %v1719 = vpop.f32.mrf.mxu0
        %v1720 = vadd.f32 0.0, %v1719
        %1721 = vmatmul.f32.gmra.mxu0 %v1622
        %v1722 = vpop.f32.mrf.mxu0
        %v1723 = vadd.f32 0.0, %v1722
        %1724 = vmatmul.f32.gmra.mxu0 %v1625
        %v1725 = vpop.f32.mrf.mxu0
        %v1726 = vadd.f32 0.0, %v1725
        %1727 = vmatmul.f32.gmra.mxu0 %v1628
        %v1728 = vpop.f32.mrf.mxu0
        %v1729 = vadd.f32 0.0, %v1728
        %1730 = vmatmul.f32.gmra.mxu0 %v1631
        %v1731 = vpop.f32.mrf.mxu0
        %v1732 = vadd.f32 0.0, %v1731
        %1733 = vmatmul.f32.gmra.mxu0 %v1634
        %v1734 = vpop.f32.mrf.mxu0
        %v1735 = vadd.f32 0.0, %v1734
        %1736 = vmatmul.f32.gmra.mxu0 %v1637
        %v1737 = vpop.f32.mrf.mxu0
        %v1738 = vadd.f32 0.0, %v1737
        %1739 = vmatmul.f32.gmra.mxu0 %v1640
        %v1740 = vpop.f32.mrf.mxu0
        %v1741 = vadd.f32 0.0, %v1740
        %1742 = vmatmul.f32.gmra.mxu0 %v1643
        %v1743 = vpop.f32.mrf.mxu0
        %v1744 = vadd.f32 0.0, %v1743
        %1745 = vmatmul.f32.gmra.mxu0 %v1646
        %v1746 = vpop.f32.mrf.mxu0
        %v1747 = vadd.f32 0.0, %v1746
        %1748 = vmatmul.f32.gmra.mxu0 %v1649
        %v1749 = vpop.f32.mrf.mxu0
        %v1750 = vadd.f32 0.0, %v1749
        %1751 = vmatmul.f32.gmra.mxu0 %v1652
        %v1752 = vpop.f32.mrf.mxu0
        %v1753 = vadd.f32 0.0, %v1752
        %1754 = vmatmul.f32.gmra.mxu0 %v1655
        %v1755 = vpop.f32.mrf.mxu0
        %v1756 = vadd.f32 0.0, %v1755
        %1757 = vmatmul.f32.gmra.mxu0 %v1658
        %v1758 = vpop.f32.mrf.mxu0
        %v1759 = vadd.f32 0.0, %v1758
        %1760 = vmatmul.f32.gmra.mxu0 %v1661
        %v1761 = vpop.f32.mrf.mxu0
        %v1762 = vadd.f32 0.0, %v1761
        %1763 = vmatmul.f32.gmra.mxu0 %v1664
        %v1764 = vpop.f32.mrf.mxu0
        %v1765 = vadd.f32 0.0, %v1764
        %1766 = vdwg.mxu0
        %v1767 = vadd.f32 %v1229, %v1684
        %v1768 = vadd.f32 %v1230, %v1687
        %v1769 = vadd.f32 %v1231, %v1690
        %v1770 = vadd.f32 %v1232, %v1693
        %v1771 = vadd.f32 %v1233, %v1696
        %v1772 = vadd.f32 %v1234, %v1699
        %v1773 = vadd.f32 %v1235, %v1702
        %v1774 = vadd.f32 %v1236, %v1705
        %v1775 = vadd.f32 %v1237, %v1708
        %v1776 = vadd.f32 %v1238, %v1711
        %v1777 = vadd.f32 %v1239, %v1714
        %v1778 = vadd.f32 %v1240, %v1717
        %v1779 = vadd.f32 %v1241, %v1720
        %v1780 = vadd.f32 %v1242, %v1723
        %v1781 = vadd.f32 %v1243, %v1726
        %v1782 = vadd.f32 %v1244, %v1729
        %v1783 = vadd.f32 %v1245, %v1732
        %v1784 = vadd.f32 %v1246, %v1735
        %v1785 = vadd.f32 %v1247, %v1738
        %v1786 = vadd.f32 %v1248, %v1741
        %v1787 = vadd.f32 %v1249, %v1744
        %v1788 = vadd.f32 %v1250, %v1747
        %v1789 = vadd.f32 %v1251, %v1750
        %v1790 = vadd.f32 %v1252, %v1753
        %v1791 = vadd.f32 %v1253, %v1756
        %v1792 = vadd.f32 %v1254, %v1759
        %v1793 = vadd.f32 %v1255, %v1762
        %v1794 = vadd.f32 %v1256, %v1765
        %v1795 = vadd.f32 %v1767, %v1228
        %v1796 = vadd.f32 %v1768, %v1228
        %v1797 = vadd.f32 %v1769, %v1228
        %v1798 = vadd.f32 %v1770, %v1228
        %v1799 = vadd.f32 %v1771, %v1228
        %v1800 = vadd.f32 %v1772, %v1228
        %v1801 = vadd.f32 %v1773, %v1228
        %v1802 = vadd.f32 %v1774, %v1228
        %v1803 = vadd.f32 %v1775, %v1228
        %v1804 = vadd.f32 %v1776, %v1228
        %v1805 = vadd.f32 %v1777, %v1228
        %v1806 = vadd.f32 %v1778, %v1228
        %v1807 = vadd.f32 %v1779, %v1228
        %v1808 = vadd.f32 %v1780, %v1228
        %v1809 = vadd.f32 %v1781, %v1228
        %v1810 = vadd.f32 %v1782, %v1228
        %v1811 = vadd.f32 %v1783, %v1228
        %v1812 = vadd.f32 %v1784, %v1228
        %v1813 = vadd.f32 %v1785, %v1228
        %v1814 = vadd.f32 %v1786, %v1228
        %v1815 = vadd.f32 %v1787, %v1228
        %v1816 = vadd.f32 %v1788, %v1228
        %v1817 = vadd.f32 %v1789, %v1228
        %v1818 = vadd.f32 %v1790, %v1228
        %v1819 = vadd.f32 %v1791, %v1228
        %v1820 = vadd.f32 %v1792, %v1228
        %v1821 = vadd.f32 %v1793, %v1228
        %v1822 = vadd.f32 %v1794, %v1228
        %v1823 = vperm.slane %v249, 4
        %v1825 = vsel %vm494, %v1795, 0
        %v1828 = vsel %vm494, %v1796, 0
        %v1831 = vsel %vm494, %v1797, 0
        %v1834 = vsel %vm494, %v1798, 0
        %v1837 = vsel %vm494, %v1799, 0
        %v1840 = vsel %vm494, %v1800, 0
        %v1843 = vsel %vm494, %v1801, 0
        %v1846 = vsel %vm494, %v1802, 0
        %v1849 = vsel %vm494, %v1803, 0
        %v1852 = vsel %vm494, %v1804, 0
        %v1855 = vsel %vm494, %v1805, 0
        %v1858 = vsel %vm494, %v1806, 0
        %v1861 = vsel %vm494, %v1807, 0
        %v1864 = vsel %vm494, %v1808, 0
        %v1867 = vsel %vm494, %v1809, 0
        %v1870 = vsel %vm494, %v1810, 0
        %v1873 = vsel %vm494, %v1811, 0
        %v1876 = vsel %vm494, %v1812, 0
        %v1879 = vsel %vm494, %v1813, 0
        %v1882 = vsel %vm494, %v1814, 0
        %v1885 = vsel %vm494, %v1815, 0
        %v1888 = vsel %vm494, %v1816, 0
        %v1891 = vsel %vm494, %v1817, 0
        %v1894 = vsel %vm494, %v1818, 0
        %v1897 = vsel %vm494, %v1819, 0
        %v1900 = vsel %vm494, %v1820, 0
        %v1903 = vsel %vm494, %v1821, 0
        %v1906 = vsel %vm494, %v1822, 0
        %1908 = vmatpush.msra.mxu0 0.0
        %1909 = vmatpush.msra.mxu0 0.0
        %1910 = vmatpush.msra.mxu0 0.0
        %1911 = vmatpush.msra.mxu0 0.0
        %1912 = vmatpush.msra.mxu0 0.0
        %1913 = vmatpush.msra.mxu0 0.0
        %1914 = vmatpush.msra.mxu0 0.0
        %1915 = vmatpush.msra.mxu0 0.0
        %1916 = vmatpush.msra.mxu0 0.0
        %1917 = vmatpush.msra.mxu0 0.0
        %1918 = vmatpush.msra.mxu0 0.0
        %1919 = vmatpush.msra.mxu0 0.0
        %1920 = vmatpush.msra.mxu0 %v244
        %1921 = vmatpush.msra.mxu0 %v243
        %1922 = vmatpush.msra.mxu0 %v242
        %1923 = vmatpush.msra.mxu0 %v241
        %1924 = vmatmul.f32.gmra.mxu0 %v1825
        %v1925 = vpop.f32.mrf.mxu0
        %v1926 = vadd.f32 %v1823, %v1925
        %1927 = vmatmul.f32.gmra.mxu0 %v1828
        %v1928 = vpop.f32.mrf.mxu0
        %v1929 = vadd.f32 %v1823, %v1928
        %1930 = vmatmul.f32.gmra.mxu0 %v1831
        %v1931 = vpop.f32.mrf.mxu0
        %v1932 = vadd.f32 %v1823, %v1931
        %1933 = vmatmul.f32.gmra.mxu0 %v1834
        %v1934 = vpop.f32.mrf.mxu0
        %v1935 = vadd.f32 %v1823, %v1934
        %1936 = vmatmul.f32.gmra.mxu0 %v1837
        %v1937 = vpop.f32.mrf.mxu0
        %v1938 = vadd.f32 %v1823, %v1937
        %1939 = vmatmul.f32.gmra.mxu0 %v1840
        %v1940 = vpop.f32.mrf.mxu0
        %v1941 = vadd.f32 %v1823, %v1940
        %1942 = vmatmul.f32.gmra.mxu0 %v1843
        %v1943 = vpop.f32.mrf.mxu0
        %v1944 = vadd.f32 %v1823, %v1943
        %1945 = vmatmul.f32.gmra.mxu0 %v1846
        %v1946 = vpop.f32.mrf.mxu0
        %v1947 = vadd.f32 %v1823, %v1946
        %1948 = vmatmul.f32.gmra.mxu0 %v1849
        %v1949 = vpop.f32.mrf.mxu0
        %v1950 = vadd.f32 %v1823, %v1949
        %1951 = vmatmul.f32.gmra.mxu0 %v1852
        %v1952 = vpop.f32.mrf.mxu0
        %v1953 = vadd.f32 %v1823, %v1952
        %1954 = vmatmul.f32.gmra.mxu0 %v1855
        %v1955 = vpop.f32.mrf.mxu0
        %v1956 = vadd.f32 %v1823, %v1955
        %1957 = vmatmul.f32.gmra.mxu0 %v1858
        %v1958 = vpop.f32.mrf.mxu0
        %v1959 = vadd.f32 %v1823, %v1958
        %1960 = vmatmul.f32.gmra.mxu0 %v1861
        %v1961 = vpop.f32.mrf.mxu0
        %v1962 = vadd.f32 %v1823, %v1961
        %1963 = vmatmul.f32.gmra.mxu0 %v1864
        %v1964 = vpop.f32.mrf.mxu0
        %v1965 = vadd.f32 %v1823, %v1964
        %1966 = vmatmul.f32.gmra.mxu0 %v1867
        %v1967 = vpop.f32.mrf.mxu0
        %v1968 = vadd.f32 %v1823, %v1967
        %1969 = vmatmul.f32.gmra.mxu0 %v1870
        %v1970 = vpop.f32.mrf.mxu0
        %v1971 = vadd.f32 %v1823, %v1970
        %1972 = vmatmul.f32.gmra.mxu0 %v1873
        %v1973 = vpop.f32.mrf.mxu0
        %v1974 = vadd.f32 %v1823, %v1973
        %1975 = vmatmul.f32.gmra.mxu0 %v1876
        %v1976 = vpop.f32.mrf.mxu0
        %v1977 = vadd.f32 %v1823, %v1976
        %1978 = vmatmul.f32.gmra.mxu0 %v1879
        %v1979 = vpop.f32.mrf.mxu0
        %v1980 = vadd.f32 %v1823, %v1979
        %1981 = vmatmul.f32.gmra.mxu0 %v1882
        %v1982 = vpop.f32.mrf.mxu0
        %v1983 = vadd.f32 %v1823, %v1982
        %1984 = vmatmul.f32.gmra.mxu0 %v1885
        %v1985 = vpop.f32.mrf.mxu0
        %v1986 = vadd.f32 %v1823, %v1985
        %1987 = vmatmul.f32.gmra.mxu0 %v1888
        %v1988 = vpop.f32.mrf.mxu0
        %v1989 = vadd.f32 %v1823, %v1988
        %1990 = vmatmul.f32.gmra.mxu0 %v1891
        %v1991 = vpop.f32.mrf.mxu0
        %v1992 = vadd.f32 %v1823, %v1991
        %1993 = vmatmul.f32.gmra.mxu0 %v1894
        %v1994 = vpop.f32.mrf.mxu0
        %v1995 = vadd.f32 %v1823, %v1994
        %1996 = vmatmul.f32.gmra.mxu0 %v1897
        %v1997 = vpop.f32.mrf.mxu0
        %v1998 = vadd.f32 %v1823, %v1997
        %1999 = vmatmul.f32.gmra.mxu0 %v1900
        %v2000 = vpop.f32.mrf.mxu0
        %v2001 = vadd.f32 %v1823, %v2000
        %2002 = vmatmul.f32.gmra.mxu0 %v1903
        %v2003 = vpop.f32.mrf.mxu0
        %v2004 = vadd.f32 %v1823, %v2003
        %2005 = vmatmul.f32.gmra.mxu0 %v1906
        %v2006 = vpop.f32.mrf.mxu0
        %v2007 = vadd.f32 %v1823, %v2006
        %2008 = vdwg.mxu0
        %v2009 = vmax.f32 %v1926, 0.0
        %v2010 = vmax.f32 %v1929, 0.0
        %v2011 = vmax.f32 %v1932, 0.0
        %v2012 = vmax.f32 %v1935, 0.0
        %v2013 = vmax.f32 %v1938, 0.0
        %v2014 = vmax.f32 %v1941, 0.0
        %v2015 = vmax.f32 %v1944, 0.0
        %v2016 = vmax.f32 %v1947, 0.0
        %v2017 = vmax.f32 %v1950, 0.0
        %v2018 = vmax.f32 %v1953, 0.0
        %v2019 = vmax.f32 %v1956, 0.0
        %v2020 = vmax.f32 %v1959, 0.0
        %v2021 = vmax.f32 %v1962, 0.0
        %v2022 = vmax.f32 %v1965, 0.0
        %v2023 = vmax.f32 %v1968, 0.0
        %v2024 = vmax.f32 %v1971, 0.0
        %v2025 = vmax.f32 %v1974, 0.0
        %v2026 = vmax.f32 %v1977, 0.0
        %v2027 = vmax.f32 %v1980, 0.0
        %v2028 = vmax.f32 %v1983, 0.0
        %v2029 = vmax.f32 %v1986, 0.0
        %v2030 = vmax.f32 %v1989, 0.0
        %v2031 = vmax.f32 %v1992, 0.0
        %v2032 = vmax.f32 %v1995, 0.0
        %v2033 = vmax.f32 %v1998, 0.0
        %v2034 = vmax.f32 %v2001, 0.0
        %v2035 = vmax.f32 %v2004, 0.0
        %v2036 = vmax.f32 %v2007, 0.0
        %v2037 = vperm.slane %v249, 5
        %v2039 = vsel %vm494, %v2009, 0
        %v2042 = vsel %vm494, %v2010, 0
        %v2045 = vsel %vm494, %v2011, 0
        %v2048 = vsel %vm494, %v2012, 0
        %v2051 = vsel %vm494, %v2013, 0
        %v2054 = vsel %vm494, %v2014, 0
        %v2057 = vsel %vm494, %v2015, 0
        %v2060 = vsel %vm494, %v2016, 0
        %v2063 = vsel %vm494, %v2017, 0
        %v2066 = vsel %vm494, %v2018, 0
        %v2069 = vsel %vm494, %v2019, 0
        %v2072 = vsel %vm494, %v2020, 0
        %v2075 = vsel %vm494, %v2021, 0
        %v2078 = vsel %vm494, %v2022, 0
        %v2081 = vsel %vm494, %v2023, 0
        %v2084 = vsel %vm494, %v2024, 0
        %v2087 = vsel %vm494, %v2025, 0
        %v2090 = vsel %vm494, %v2026, 0
        %v2093 = vsel %vm494, %v2027, 0
        %v2096 = vsel %vm494, %v2028, 0
        %v2099 = vsel %vm494, %v2029, 0
        %v2102 = vsel %vm494, %v2030, 0
        %v2105 = vsel %vm494, %v2031, 0
        %v2108 = vsel %vm494, %v2032, 0
        %v2111 = vsel %vm494, %v2033, 0
        %v2114 = vsel %vm494, %v2034, 0
        %v2117 = vsel %vm494, %v2035, 0
        %v2120 = vsel %vm494, %v2036, 0
        %2122 = vmatpush.msra.mxu0 0.0
        %2123 = vmatpush.msra.mxu0 0.0
        %2124 = vmatpush.msra.mxu0 0.0
        %2125 = vmatpush.msra.mxu0 0.0
        %2126 = vmatpush.msra.mxu0 0.0
        %2127 = vmatpush.msra.mxu0 0.0
        %2128 = vmatpush.msra.mxu0 0.0
        %2129 = vmatpush.msra.mxu0 0.0
        %2130 = vmatpush.msra.mxu0 0.0
        %2131 = vmatpush.msra.mxu0 0.0
        %2132 = vmatpush.msra.mxu0 0.0
        %2133 = vmatpush.msra.mxu0 0.0
        %2134 = vmatpush.msra.mxu0 %v248
        %2135 = vmatpush.msra.mxu0 %v247
        %2136 = vmatpush.msra.mxu0 %v246
        %2137 = vmatpush.msra.mxu0 %v245
        %2138 = vmatmul.f32.gmra.mxu0 %v2039
        %v2139 = vpop.f32.mrf.mxu0
        %v2140 = vadd.f32 %v2037, %v2139
        %2141 = vmatmul.f32.gmra.mxu0 %v2042
        %v2142 = vpop.f32.mrf.mxu0
        %v2143 = vadd.f32 %v2037, %v2142
        %2144 = vmatmul.f32.gmra.mxu0 %v2045
        %v2145 = vpop.f32.mrf.mxu0
        %v2146 = vadd.f32 %v2037, %v2145
        %2147 = vmatmul.f32.gmra.mxu0 %v2048
        %v2148 = vpop.f32.mrf.mxu0
        %v2149 = vadd.f32 %v2037, %v2148
        %2150 = vmatmul.f32.gmra.mxu0 %v2051
        %v2151 = vpop.f32.mrf.mxu0
        %v2152 = vadd.f32 %v2037, %v2151
        %2153 = vmatmul.f32.gmra.mxu0 %v2054
        %v2154 = vpop.f32.mrf.mxu0
        %v2155 = vadd.f32 %v2037, %v2154
        %2156 = vmatmul.f32.gmra.mxu0 %v2057
        %v2157 = vpop.f32.mrf.mxu0
        %v2158 = vadd.f32 %v2037, %v2157
        %2159 = vmatmul.f32.gmra.mxu0 %v2060
        %v2160 = vpop.f32.mrf.mxu0
        %v2161 = vadd.f32 %v2037, %v2160
        %2162 = vmatmul.f32.gmra.mxu0 %v2063
        %v2163 = vpop.f32.mrf.mxu0
        %v2164 = vadd.f32 %v2037, %v2163
        %2165 = vmatmul.f32.gmra.mxu0 %v2066
        %v2166 = vpop.f32.mrf.mxu0
        %v2167 = vadd.f32 %v2037, %v2166
        %2168 = vmatmul.f32.gmra.mxu0 %v2069
        %v2169 = vpop.f32.mrf.mxu0
        %v2170 = vadd.f32 %v2037, %v2169
        %2171 = vmatmul.f32.gmra.mxu0 %v2072
        %v2172 = vpop.f32.mrf.mxu0
        %v2173 = vadd.f32 %v2037, %v2172
        %2174 = vmatmul.f32.gmra.mxu0 %v2075
        %v2175 = vpop.f32.mrf.mxu0
        %v2176 = vadd.f32 %v2037, %v2175
        %2177 = vmatmul.f32.gmra.mxu0 %v2078
        %v2178 = vpop.f32.mrf.mxu0
        %v2179 = vadd.f32 %v2037, %v2178
        %2180 = vmatmul.f32.gmra.mxu0 %v2081
        %v2181 = vpop.f32.mrf.mxu0
        %v2182 = vadd.f32 %v2037, %v2181
        %2183 = vmatmul.f32.gmra.mxu0 %v2084
        %v2184 = vpop.f32.mrf.mxu0
        %v2185 = vadd.f32 %v2037, %v2184
        %2186 = vmatmul.f32.gmra.mxu0 %v2087
        %v2187 = vpop.f32.mrf.mxu0
        %v2188 = vadd.f32 %v2037, %v2187
        %2189 = vmatmul.f32.gmra.mxu0 %v2090
        %v2190 = vpop.f32.mrf.mxu0
        %v2191 = vadd.f32 %v2037, %v2190
        %2192 = vmatmul.f32.gmra.mxu0 %v2093
        %v2193 = vpop.f32.mrf.mxu0
        %v2194 = vadd.f32 %v2037, %v2193
        %2195 = vmatmul.f32.gmra.mxu0 %v2096
        %v2196 = vpop.f32.mrf.mxu0
        %v2197 = vadd.f32 %v2037, %v2196
        %2198 = vmatmul.f32.gmra.mxu0 %v2099
        %v2199 = vpop.f32.mrf.mxu0
        %v2200 = vadd.f32 %v2037, %v2199
        %2201 = vmatmul.f32.gmra.mxu0 %v2102
        %v2202 = vpop.f32.mrf.mxu0
        %v2203 = vadd.f32 %v2037, %v2202
        %2204 = vmatmul.f32.gmra.mxu0 %v2105
        %v2205 = vpop.f32.mrf.mxu0
        %v2206 = vadd.f32 %v2037, %v2205
        %2207 = vmatmul.f32.gmra.mxu0 %v2108
        %v2208 = vpop.f32.mrf.mxu0
        %v2209 = vadd.f32 %v2037, %v2208
        %2210 = vmatmul.f32.gmra.mxu0 %v2111
        %v2211 = vpop.f32.mrf.mxu0
        %v2212 = vadd.f32 %v2037, %v2211
        %2213 = vmatmul.f32.gmra.mxu0 %v2114
        %v2214 = vpop.f32.mrf.mxu0
        %v2215 = vadd.f32 %v2037, %v2214
        %2216 = vmatmul.f32.gmra.mxu0 %v2117
        %v2217 = vpop.f32.mrf.mxu0
        %v2218 = vadd.f32 %v2037, %v2217
        %2219 = vmatmul.f32.gmra.mxu0 %v2120
        %v2220 = vpop.f32.mrf.mxu0
        %v2221 = vadd.f32 %v2037, %v2220
        %2222 = vdwg.mxu0
        %v2223 = vadd.f32 %v2152, %v2164
        %v2224 = vadd.f32 %v2155, %v2167
        %v2225 = vadd.f32 %v2158, %v2170
        %v2226 = vadd.f32 %v2161, %v2173
        %v2227 = vadd.f32 %v2223, %v2176
        %v2228 = vadd.f32 %v2224, %v2179
        %v2229 = vadd.f32 %v2225, %v2182
        %v2230 = vadd.f32 %v2226, %v2185
        %v2231 = vadd.f32 %v2227, %v2188
        %v2232 = vadd.f32 %v2228, %v2191
        %v2233 = vadd.f32 %v2229, %v2194
        %v2234 = vadd.f32 %v2230, %v2197
        %v2235 = vadd.f32 %v2231, %v2200
        %v2236 = vadd.f32 %v2232, %v2203
        %v2237 = vadd.f32 %v2233, %v2206
        %v2238 = vadd.f32 %v2234, %v2209
        %v2239 = vadd.f32 %v2235, %v2212
        %v2240 = vadd.f32 %v2236, %v2215
        %v2241 = vadd.f32 %v2237, %v2218
        %v2242 = vadd.f32 %v2238, %v2221
        %v2243 = vadd.f32 %v2239, 1e-15
        %v2244 = vadd.f32 %v2240, 1e-15
        %v2245 = vadd.f32 %v2241, 1e-15
        %v2246 = vadd.f32 %v2242, 1e-15
        %v2247 = vrcp.pop %v2243
        %v2248 = vrcp.pop %v2244
        %v2249 = vrcp.pop %v2245
        %v2250 = vrcp.pop %v2246
        %v2251 = vmul.f32 %v2243, %v2247
        %v2252 = vmul.f32 %v2244, %v2248
        %v2253 = vmul.f32 %v2245, %v2249
        %v2254 = vmul.f32 %v2246, %v2250
        %v2255 = vsub.f32 2.0, %v2251
        %v2256 = vsub.f32 2.0, %v2252
        %v2257 = vsub.f32 2.0, %v2253
        %v2258 = vsub.f32 2.0, %v2254
        %v2259 = vmul.f32 %v2247, %v2255
        %v2260 = vmul.f32 %v2248, %v2256
        %v2261 = vmul.f32 %v2249, %v2257
        %v2262 = vmul.f32 %v2250, %v2258
        %v2263 = vld [vmem:[%s216] sm:$0xff]
        %v2264 = vld [vmem:[%s216 + $0x8] sm:$0xff]
        %v2265 = vld [vmem:[%s216 + $0x10] sm:$0xff]
        %v2266 = vld [vmem:[%s216 + $0x18] sm:$0xff]
        %v2267 = vmul.f32 %v2263, %v2259
        %v2268 = vmul.f32 %v2264, %v2260
        %v2269 = vmul.f32 %v2265, %v2261
        %v2270 = vmul.f32 %v2266, %v2262
        %v2271 = vmin.f32 %v2267, 1.0
        %v2272 = vmin.f32 %v2268, 1.0
        %v2273 = vmin.f32 %v2269, 1.0
        %v2274 = vmin.f32 %v2270, 1.0
        %v2275 = vlaneseq
        %v2276 = vand.u32 %v2275, 127
        %vm2277 = vcmp.eq.s32.totalorder %v2276, 0
        %v2278 = vsel %vm2277, 1, 0
        %vm2279 = vcmp.eq.s32.totalorder %v2278, 1
        %2281 = vset.pattern.permute.xlu0 0
        %2282 = vperm.xlu0 %2281, %v2140
        %v2283 = vpop.permute.xlu0 %2282
        %2286 = vset.pattern.permute.xlu0 0
        %2287 = vperm.xlu0 %2286, %v2143
        %v2288 = vpop.permute.xlu0 %2287
        %2291 = vset.pattern.permute.xlu0 0
        %2292 = vperm.xlu0 %2291, %v2146
        %v2293 = vpop.permute.xlu0 %2292
        %2296 = vset.pattern.permute.xlu0 0
        %2297 = vperm.xlu0 %2296, %v2149
        %v2298 = vpop.permute.xlu0 %2297
        %v2300 = vsel %vm2279, %v2283, 0.0
        %v2301 = vsel %vm2279, %v2288, 0.0
        %v2302 = vsel %vm2279, %v2293, 0.0
        %v2303 = vsel %vm2279, %v2298, 0.0
        %vm2304 = vcmp.eq.s32.totalorder %v2276, 1
        %v2305 = vmul.f32 %v2152, %v2271
        %v2306 = vmul.f32 %v2155, %v2272
        %v2307 = vmul.f32 %v2158, %v2273
        %v2308 = vmul.f32 %v2161, %v2274
        %v2309 = vsel %vm2304, 1, 0
        %vm2310 = vcmp.eq.s32.totalorder %v2309, 1
        %2312 = vset.pattern.permute.xlu0 0
        %2313 = vperm.xlu0 %2312, %v2305
        %v2314 = vpop.permute.xlu0 %2313
        %2317 = vset.pattern.permute.xlu0 0
        %2318 = vperm.xlu0 %2317, %v2306
        %v2319 = vpop.permute.xlu0 %2318
        %2322 = vset.pattern.permute.xlu0 0
        %2323 = vperm.xlu0 %2322, %v2307
        %v2324 = vpop.permute.xlu0 %2323
        %2327 = vset.pattern.permute.xlu0 0
        %2328 = vperm.xlu0 %2327, %v2308
        %v2329 = vpop.permute.xlu0 %2328
        %v2331 = vsel %vm2310, %v2314, 0.0
        %v2332 = vsel %vm2310, %v2319, 0.0
        %v2333 = vsel %vm2310, %v2324, 0.0
        %v2334 = vsel %vm2310, %v2329, 0.0
        %v2335 = vadd.f32 %v2300, %v2331
        %v2336 = vadd.f32 %v2301, %v2332
        %v2337 = vadd.f32 %v2302, %v2333
        %v2338 = vadd.f32 %v2303, %v2334
        %vm2339 = vcmp.eq.s32.totalorder %v2276, 2
        %v2340 = vmul.f32 %v2164, %v2271
        %v2341 = vmul.f32 %v2167, %v2272
        %v2342 = vmul.f32 %v2170, %v2273
        %v2343 = vmul.f32 %v2173, %v2274
        %v2344 = vsel %vm2339, 1, 0
        %vm2345 = vcmp.eq.s32.totalorder %v2344, 1
        %2347 = vset.pattern.permute.xlu0 0
        %2348 = vperm.xlu0 %2347, %v2340
        %v2349 = vpop.permute.xlu0 %2348
        %2352 = vset.pattern.permute.xlu0 0
        %2353 = vperm.xlu0 %2352, %v2341
        %v2354 = vpop.permute.xlu0 %2353
        %2357 = vset.pattern.permute.xlu0 0
        %2358 = vperm.xlu0 %2357, %v2342
        %v2359 = vpop.permute.xlu0 %2358
        %2362 = vset.pattern.permute.xlu0 0
        %2363 = vperm.xlu0 %2362, %v2343
        %v2364 = vpop.permute.xlu0 %2363
        %v2366 = vsel %vm2345, %v2349, 0.0
        %v2367 = vsel %vm2345, %v2354, 0.0
        %v2368 = vsel %vm2345, %v2359, 0.0
        %v2369 = vsel %vm2345, %v2364, 0.0
        %v2370 = vadd.f32 %v2335, %v2366
        %v2371 = vadd.f32 %v2336, %v2367
        %v2372 = vadd.f32 %v2337, %v2368
        %v2373 = vadd.f32 %v2338, %v2369
        %vm2374 = vcmp.eq.s32.totalorder %v2276, 3
        %v2375 = vmul.f32 %v2176, %v2271
        %v2376 = vmul.f32 %v2179, %v2272
        %v2377 = vmul.f32 %v2182, %v2273
        %v2378 = vmul.f32 %v2185, %v2274
        %v2379 = vsel %vm2374, 1, 0
        %vm2380 = vcmp.eq.s32.totalorder %v2379, 1
        %2382 = vset.pattern.permute.xlu0 0
        %2383 = vperm.xlu0 %2382, %v2375
        %v2384 = vpop.permute.xlu0 %2383
        %2387 = vset.pattern.permute.xlu0 0
        %2388 = vperm.xlu0 %2387, %v2376
        %v2389 = vpop.permute.xlu0 %2388
        %2392 = vset.pattern.permute.xlu0 0
        %2393 = vperm.xlu0 %2392, %v2377
        %v2394 = vpop.permute.xlu0 %2393
        %2397 = vset.pattern.permute.xlu0 0
        %2398 = vperm.xlu0 %2397, %v2378
        %v2399 = vpop.permute.xlu0 %2398
        %v2401 = vsel %vm2380, %v2384, 0.0
        %v2402 = vsel %vm2380, %v2389, 0.0
        %v2403 = vsel %vm2380, %v2394, 0.0
        %v2404 = vsel %vm2380, %v2399, 0.0
        %v2405 = vadd.f32 %v2370, %v2401
        %v2406 = vadd.f32 %v2371, %v2402
        %v2407 = vadd.f32 %v2372, %v2403
        %v2408 = vadd.f32 %v2373, %v2404
        %vm2409 = vcmp.eq.s32.totalorder %v2276, 4
        %v2410 = vmul.f32 %v2188, %v2271
        %v2411 = vmul.f32 %v2191, %v2272
        %v2412 = vmul.f32 %v2194, %v2273
        %v2413 = vmul.f32 %v2197, %v2274
        %v2414 = vsel %vm2409, 1, 0
        %vm2415 = vcmp.eq.s32.totalorder %v2414, 1
        %2417 = vset.pattern.permute.xlu0 0
        %2418 = vperm.xlu0 %2417, %v2410
        %v2419 = vpop.permute.xlu0 %2418
        %2422 = vset.pattern.permute.xlu0 0
        %2423 = vperm.xlu0 %2422, %v2411
        %v2424 = vpop.permute.xlu0 %2423
        %2427 = vset.pattern.permute.xlu0 0
        %2428 = vperm.xlu0 %2427, %v2412
        %v2429 = vpop.permute.xlu0 %2428
        %2432 = vset.pattern.permute.xlu0 0
        %2433 = vperm.xlu0 %2432, %v2413
        %v2434 = vpop.permute.xlu0 %2433
        %v2436 = vsel %vm2415, %v2419, 0.0
        %v2437 = vsel %vm2415, %v2424, 0.0
        %v2438 = vsel %vm2415, %v2429, 0.0
        %v2439 = vsel %vm2415, %v2434, 0.0
        %v2440 = vadd.f32 %v2405, %v2436
        %v2441 = vadd.f32 %v2406, %v2437
        %v2442 = vadd.f32 %v2407, %v2438
        %v2443 = vadd.f32 %v2408, %v2439
        %vm2444 = vcmp.eq.s32.totalorder %v2276, 5
        %v2445 = vmul.f32 %v2200, %v2271
        %v2446 = vmul.f32 %v2203, %v2272
        %v2447 = vmul.f32 %v2206, %v2273
        %v2448 = vmul.f32 %v2209, %v2274
        %v2449 = vsel %vm2444, 1, 0
        %vm2450 = vcmp.eq.s32.totalorder %v2449, 1
        %2452 = vset.pattern.permute.xlu0 0
        %2453 = vperm.xlu0 %2452, %v2445
        %v2454 = vpop.permute.xlu0 %2453
        %2457 = vset.pattern.permute.xlu0 0
        %2458 = vperm.xlu0 %2457, %v2446
        %v2459 = vpop.permute.xlu0 %2458
        %2462 = vset.pattern.permute.xlu0 0
        %2463 = vperm.xlu0 %2462, %v2447
        %v2464 = vpop.permute.xlu0 %2463
        %2467 = vset.pattern.permute.xlu0 0
        %2468 = vperm.xlu0 %2467, %v2448
        %v2469 = vpop.permute.xlu0 %2468
        %v2471 = vsel %vm2450, %v2454, 0.0
        %v2472 = vsel %vm2450, %v2459, 0.0
        %v2473 = vsel %vm2450, %v2464, 0.0
        %v2474 = vsel %vm2450, %v2469, 0.0
        %v2475 = vadd.f32 %v2440, %v2471
        %v2476 = vadd.f32 %v2441, %v2472
        %v2477 = vadd.f32 %v2442, %v2473
        %v2478 = vadd.f32 %v2443, %v2474
        %vm2479 = vcmp.eq.s32.totalorder %v2276, 6
        %v2480 = vmul.f32 %v2212, %v2271
        %v2481 = vmul.f32 %v2215, %v2272
        %v2482 = vmul.f32 %v2218, %v2273
        %v2483 = vmul.f32 %v2221, %v2274
        %v2484 = vsel %vm2479, 1, 0
        %vm2485 = vcmp.eq.s32.totalorder %v2484, 1
        %2487 = vset.pattern.permute.xlu0 0
        %2488 = vperm.xlu0 %2487, %v2480
        %v2489 = vpop.permute.xlu0 %2488
        %2492 = vset.pattern.permute.xlu0 0
        %2493 = vperm.xlu0 %2492, %v2481
        %v2494 = vpop.permute.xlu0 %2493
        %2497 = vset.pattern.permute.xlu0 0
        %2498 = vperm.xlu0 %2497, %v2482
        %v2499 = vpop.permute.xlu0 %2498
        %2502 = vset.pattern.permute.xlu0 0
        %2503 = vperm.xlu0 %2502, %v2483
        %v2504 = vpop.permute.xlu0 %2503
        %v2506 = vsel %vm2485, %v2489, 0.0
        %v2507 = vsel %vm2485, %v2494, 0.0
        %v2508 = vsel %vm2485, %v2499, 0.0
        %v2509 = vsel %vm2485, %v2504, 0.0
        %v2510 = vadd.f32 %v2475, %v2506
        %v2511 = vadd.f32 %v2476, %v2507
        %v2512 = vadd.f32 %v2477, %v2508
        %v2513 = vadd.f32 %v2478, %v2509
        %2514 = vst [vmem:[%s206] sm:$0xff] %v2510
        %2515 = vst [vmem:[%s206 + $0x8] sm:$0xff] %v2511
        %2516 = vst [vmem:[%s206 + $0x10] sm:$0xff] %v2512
        %2517 = vst [vmem:[%s206 + $0x18] sm:$0xff] %v2513
        %s2518 = sand.u32 %s120, 1
        %s2519 = scalar_lea.sflag [#allocation3], %s2518
        %s2520 = sand.u32 %s120, 1
        %s2521 = smul.addr %s2520, 32
        %s2522 = scalar_lea.vmem [#allocation2], %s2521
        // Predicated region
        $region37: #{tpu_custom_call.1} parent=35 // pred_check
          %p2523 = pneg %p130
        $region38: #{tpu_custom_call.1} parent=35 // pred_check_branch
          %2525 = sbr.rel (%p2523) target = $region40
        $region39: #{tpu_custom_call.1} parent=35 // pred_region
          %s2526 = smul.u32 4, %s18
          %2528 = vsyncadd %s2519, 0
          %s2529 = smul.addr %s2526, 8
          %s2530 = scalar_lea.hbm %s4, %s2529
          %s2531 = sshll.u32 %s2522, 4
          %s2532 = int_to_ptr.vmem [resolvable:$true] %s2531
          %s2533 = sshll.u32 %s2530, 4
          %s2534 = int_to_ptr.hbm [resolvable:$true] %s2533
          %2539 = dma.vmem_to_hbm [thread:$0]  %s2532, 512, %s2534, %s2519, 128, 128, 8
        $region40: #{tpu_custom_call.1} parent=35 // pred_fallthru
          _
      $region36: #{tpu_custom_call.1} parent=5 // pred_fallthru
        _
      %p2540 = scmp.le.s32.totalorder 2, %s13
      // Predicated region
      $region41: #{tpu_custom_call.1} parent=5 // pred_check
        %p2541 = pneg %p2540
      $region42: #{tpu_custom_call.1} parent=5 // pred_check_branch
        %2543 = sbr.rel (%p2541) target = $region44
      $region43: #{tpu_custom_call.1} parent=5 // pred_region
        %s2544 = ssub.s32 %s13, 2
        // Predicated region
        $region45: #{tpu_custom_call.1} parent=43 // pred_check
          %p2545 = pneg %p136
        $region46: #{tpu_custom_call.1} parent=43 // pred_check_branch
          %2547 = sbr.rel (%p2545) target = $region48
        $region47: #{tpu_custom_call.1} parent=43 // pred_region
          %s2548 = sand.u32 %s121, 1
          %s2549 = scalar_lea.sflag [#allocation3], %s2548
          %s2550 = sand.u32 %s121, 1
          %s2551 = smul.addr %s2550, 32
          %s2552 = scalar_lea.vmem [#allocation2], %s2551
          %2554 = dma.done %s2549, 512
        $region48: #{tpu_custom_call.1} parent=43 // pred_fallthru
          _
      $region44: #{tpu_custom_call.1} parent=5 // pred_fallthru
        _
    $region6: #{tpu_custom_call.1} parent=1 // loop_footer
      %s17 = sadd.s32 1, %s13
    $region7: #{tpu_custom_call.1} parent=1 // loop_footer_branch
      %12 = sbr.rel target = $region3
    $region8: #{tpu_custom_call.1} parent=1 // loop_exit
      _
    %2555 = vsyncpa [#allocation3], 1
    %s2556 = scalar_lea.sflag [#allocation3], 1
    %2557 = vsyncpa %s2556, 1

</llo_original>
